<compile_context>
chip_gen: v7x
topology: tpu7x:2x2x1
jax: 0.10.0
libtpu: 0.0.40
codegen_flags: <defaults>
</compile_context>

<pallas_src>
import functools

import jax
import jax.numpy as jnp
from jax.experimental import pallas as pl
from jax.experimental.pallas import tpu as pltpu


def _round_up(x, m):
    return (x + m - 1) // m * m


def _textcnn_kernel(tok_ref, tab_ref, w_ref, b_ref, mask_ref, wfc_ref, bfc_ref, out_ref,
                    *, k_max, seq_len, vocab_pad):
    """One batch tile: gather -> fused conv taps -> bias/ReLU -> masked max -> FC."""
    tb, l_pad, _ = tok_ref.shape
    l = seq_len

    # ---- embedding gather as a one-hot matmul (MXU) --------------------------------------
    tok = tok_ref[...]                                                    # (TB, Lpad, 1) i32
    iota_v = jax.lax.broadcasted_iota(jnp.int32, (tb, l_pad, vocab_pad), 2)
    onehot = (iota_v == tok).astype(jnp.bfloat16)                         # (TB, Lpad, Vp)
    emb = jax.lax.dot_general(
        onehot, tab_ref[...],
        dimension_numbers=(((2,), (0,)), ((), ())),
        preferred_element_type=jnp.float32)                               # (TB, Lpad, D) f32

    # ---- all conv branches fused: one matmul per tap j, accumulated in f32 ----------------
    acc = None
    for j in range(k_max):
        lhs = emb[:, j:j + l, :].astype(jnp.bfloat16)                     # (TB, L, D) bf16
        part = jax.lax.dot_general(
            lhs, w_ref[j],                                                # (D, Np) bf16
            dimension_numbers=(((2,), (0,)), ((), ())),
            preferred_element_type=jnp.float32)                           # (TB, L, Np) f32
        acc = part if acc is None else acc + part

    # ---- bias + ReLU + validity mask + max-over-time (VPU / XLU) --------------------------
    act = jnp.maximum(acc + b_ref[...], 0.0)                              # (TB, L, Np)
    # Invalid time positions (t > L - k for that branch's columns) are set to -inf so they can
    # never win the max; every real column has at least one valid row since L >= k_max.
    act = jnp.where(mask_ref[...] > 0.5, act, -jnp.inf)
    pooled = jnp.max(act, axis=1)                                         # (TB, Np) f32

    # ---- final FC (branches already concatenated along the Np columns) --------------------
    logits = jnp.dot(pooled.astype(jnp.bfloat16), wfc_ref[...],
                     preferred_element_type=jnp.float32) + bfc_ref[...]   # (TB, Cp)
    out_ref[...] = logits


def textcnn_forward(tokens, emb_table, conv_ws, conv_bs, wfc, bfc, kernel_sizes,
                    *, batch_tile=8):
    """Full TextCNN forward in one Pallas kernel (embedding gather included)."""
    kernel_sizes = tuple(int(k) for k in kernel_sizes)
    n_k = len(kernel_sizes)
    k_max = max(kernel_sizes)

    B, L = tokens.shape
    V, D = emb_table.shape
    Co = conv_ws[0].shape[-1]
    C = wfc.shape[1]
    assert L >= k_max, "sequence length must be >= the largest conv kernel size"

    # Tile sizes / padded extents (all lane/sublane friendly).
    TB = max(8, _round_up(min(batch_tile, B), 8))        # multiple of 8 (sublane rule)
    B_pad = _round_up(B, TB)
    L_pad = L + k_max - 1                                # so every shifted window is in-bounds
    Vp = _round_up(V, 128)
    Np = _round_up(n_k * Co, 128)                        # merged conv output columns
    Cp = _round_up(C, 128)                               # lane-dense logits

    # ---- tokens: pad batch & time, trailing singleton dim so the in-kernel broadcast over the
    # vocab axis is a pure lane-broadcast. Padded tokens are 0; they only reach masked rows.
    tok = jnp.zeros((B_pad, L_pad), jnp.int32).at[:B, :L].set(tokens.astype(jnp.int32))
    tok = tok[:, :, None]

    # ---- vocab-padded bf16 embedding table (VMEM-resident).
    table_p = jnp.zeros((Vp, D), jnp.bfloat16).at[:V, :].set(emb_table.astype(jnp.bfloat16))

    # ---- merge all conv branches: rows zero-padded to k_max, columns concatenated + padded.
    w_big = jnp.zeros((k_max, D, Np), jnp.float32)
    b_big = jnp.zeros((1, Np), jnp.float32)
    mask = jnp.ones((L, Np), jnp.float32)                # padded cols stay "valid" -> pool to 0
    t_idx = jnp.arange(L)
    for ki, k in enumerate(kernel_sizes):
        c0, c1 = ki * Co, (ki + 1) * Co
        w_big = w_big.at[:k, :, c0:c1].set(conv_ws[ki].astype(jnp.float32))
        b_big = b_big.at[:, c0:c1].set(conv_bs[ki].astype(jnp.float32).reshape(1, Co))
        valid = (t_idx <= L - k).astype(jnp.float32)[:, None]             # (L, 1)
        mask = mask.at[:, c0:c1].set(jnp.broadcast_to(valid, (L, Co)))
    w_big = w_big.astype(jnp.bfloat16)

    # ---- FC weights padded to (Np, Cp); padded pooled columns hit zero rows.
    wfc_big = jnp.zeros((Np, Cp), jnp.bfloat16).at[:n_k * Co, :C].set(wfc.astype(jnp.bfloat16))
    bfc_big = jnp.zeros((1, Cp), jnp.float32).at[:, :C].set(bfc.astype(jnp.float32).reshape(1, C))

    kernel = functools.partial(_textcnn_kernel, k_max=k_max, seq_len=L, vocab_pad=Vp)

    out = pl.pallas_call(
        kernel,
        out_shape=jax.ShapeDtypeStruct((B_pad, Cp), jnp.float32),
        grid=(B_pad // TB,),
        in_specs=[
            pl.BlockSpec((TB, L_pad, 1), lambda b: (b, 0, 0)),    # tokens: tiled over batch
            pl.BlockSpec((Vp, D), lambda b: (0, 0)),              # emb table: resident
            pl.BlockSpec((k_max, D, Np), lambda b: (0, 0, 0)),    # merged conv weights: resident
            pl.BlockSpec((1, Np), lambda b: (0, 0)),              # merged conv bias: resident
            pl.BlockSpec((L, Np), lambda b: (0, 0)),              # time-validity mask: resident
            pl.BlockSpec((Np, Cp), lambda b: (0, 0)),             # FC weight: resident
            pl.BlockSpec((1, Cp), lambda b: (0, 0)),              # FC bias: resident
        ],
        out_specs=pl.BlockSpec((TB, Cp), lambda b: (b, 0)),       # lane-dense logits
        compiler_params=pltpu.CompilerParams(
            dimension_semantics=("parallel",),
            vmem_limit_bytes=32 * 1024 * 1024,
        ),
    )(tok, table_p, w_big, b_big, mask, wfc_big, bfc_big)

    return out[:B, :C]


def textcnn_reference(tokens, emb_table, conv_ws, conv_bs, wfc, bfc, kernel_sizes):
    """Pure-JAX f32 reference mirroring the PyTorch forward semantics."""
    emb = jnp.take(emb_table, tokens, axis=0).astype(jnp.float32)  # (B, L, D)
    L = emb.shape[1]
    pooled = []
    for (k, w_k, b_k) in zip(kernel_sizes, conv_ws, conv_bs):
        t_out = L - k + 1
        acc = jnp.zeros((emb.shape[0], t_out, w_k.shape[-1]), jnp.float32)
        for j in range(k):
            acc = acc + jnp.einsum("btd,dc->btc", emb[:, j:j + t_out, :], w_k[j])
        act = jax.nn.relu(acc + b_k)
        pooled.append(jnp.max(act, axis=1))
    feat = jnp.concatenate(pooled, axis=1)
    return feat @ wfc + bfc


if __name__ == "__main__":
    # Small, deterministic synthetic config (batch chosen so the batch-tiled grid has 2 steps).
    vocab_size = 20
    embd_dim = 32
    batch = 16
    seq_len = 16
    kernel_sizes = (3, 4, 5)
    kernel_num = 8          # Co
    class_num = 4

    key = jax.random.PRNGKey(0)
    keys = jax.random.split(key, 4 + 2 * len(kernel_sizes))

    tokens = jax.random.randint(keys[0], (batch, seq_len), 0, vocab_size, dtype=jnp.int32)
    emb_table = 0.1 * jax.random.normal(keys[1], (vocab_size, embd_dim), jnp.float32)

    conv_ws, conv_bs = [], []
    for i, k in enumerate(kernel_sizes):
        conv_ws.append(0.1 * jax.random.normal(keys[2 + 2 * i], (k, embd_dim, kernel_num),
                                               jnp.float32))
        conv_bs.append(0.1 * jax.random.normal(keys[3 + 2 * i], (1, kernel_num), jnp.float32))

    wfc = 0.1 * jax.random.normal(keys[-2], (kernel_num * len(kernel_sizes), class_num),
                                  jnp.float32)
    bfc = 0.1 * jax.random.normal(keys[-1], (1, class_num), jnp.float32)

    # TODO(synk): dropout is declared in __init__ but never applied in forward(), so it is omitted.
    # TODO(synk): for very large vocabularies the one-hot-matmul gather should become a per-row
    #             DMA gather (scalar-prefetched tokens + manual make_async_copy).

    logits = textcnn_forward(tokens, emb_table, conv_ws, conv_bs, wfc, bfc, kernel_sizes)
    logits = jax.block_until_ready(logits)

    ref = textcnn_reference(tokens, emb_table, conv_ws, conv_bs, wfc, bfc, kernel_sizes)
    assert logits.shape == (batch, class_num)
    # bf16 matmul operands inside the kernel -> compare against the f32 reference with a
    # bf16-appropriate tolerance.
    assert jnp.allclose(logits, ref, atol=2e-2, rtol=2e-2), (
        "Pallas kernel mismatch vs reference; max abs diff = "
        f"{float(jnp.max(jnp.abs(logits - ref)))}")

    print("KERNEL_OK")
</pallas_src>

<mosaic_0001>
module attributes {stable_mosaic.version = 11 : i64} {
  func.func @_textcnn_kernel(%arg0: i32, %arg1: memref<8x20x1xi32, #tpu.memory_space<vmem>>, %arg2: memref<128x32xbf16, #tpu.memory_space<vmem>>, %arg3: memref<5x32x128xbf16, #tpu.memory_space<vmem>>, %arg4: memref<1x128xf32, #tpu.memory_space<vmem>>, %arg5: memref<16x128xf32, #tpu.memory_space<vmem>>, %arg6: memref<128x128xbf16, #tpu.memory_space<vmem>>, %arg7: memref<1x128xf32, #tpu.memory_space<vmem>>, %arg8: memref<8x128xf32, #tpu.memory_space<vmem>>) attributes {dimension_semantics = [#tpu.dimension_semantics<parallel>], iteration_bounds = array<i64: 2>, scalar_prefetch = 0 : i64, scratch_operands = 0 : i64, tpu.core_type = #tpu.core_type<tc>, window_params = [{transform_indices = @transform_0, window_bounds = array<i64: 8, 20, 1>}, {pipeline_mode = #tpu.pipeline_mode<synchronous>, transform_indices = @transform_1, window_bounds = array<i64: 128, 32>}, {pipeline_mode = #tpu.pipeline_mode<synchronous>, transform_indices = @transform_2, window_bounds = array<i64: 5, 32, 128>}, {pipeline_mode = #tpu.pipeline_mode<synchronous>, transform_indices = @transform_3, window_bounds = array<i64: 1, 128>}, {pipeline_mode = #tpu.pipeline_mode<synchronous>, transform_indices = @transform_4, window_bounds = array<i64: 16, 128>}, {pipeline_mode = #tpu.pipeline_mode<synchronous>, transform_indices = @transform_5, window_bounds = array<i64: 128, 128>}, {pipeline_mode = #tpu.pipeline_mode<synchronous>, transform_indices = @transform_6, window_bounds = array<i64: 1, 128>}, {transform_indices = @transform_7, window_bounds = array<i64: 8, 128>}]} {
    %c0 = arith.constant 0 : index
    %c0_0 = arith.constant 0 : index
    %c0_1 = arith.constant 0 : index
    %0 = vector.load %arg1[%c0, %c0_0, %c0_1] : memref<8x20x1xi32, #tpu.memory_space<vmem>>, vector<8x20x1xi32>
    %1 = tpu.iota {dimensions = array<i32: 2>} : vector<8x20x128xi32>
    %2 = vector.broadcast %0 : vector<8x20x1xi32> to vector<8x20x128xi32>
    %3 = arith.cmpi eq, %1, %2 : vector<8x20x128xi32>
    %4 = arith.extui %3 : vector<8x20x128xi1> to vector<8x20x128xi32>
    %5 = arith.sitofp %4 : vector<8x20x128xi32> to vector<8x20x128xf32>
    %6 = arith.truncf %5 : vector<8x20x128xf32> to vector<8x20x128xbf16>
    %c0_2 = arith.constant 0 : index
    %c0_3 = arith.constant 0 : index
    %7 = vector.load %arg2[%c0_2, %c0_3] : memref<128x32xbf16, #tpu.memory_space<vmem>>, vector<128x32xbf16>
    %cst = arith.constant dense<0.000000e+00> : vector<8x20x32xf32>
    %8 = tpu.matmul %6, %7, %cst {dimension_numbers = #tpu.dot_dimension_numbers<[2], [0], [0, 1], [1], [0, 0, 0, 1, 1, 1], [], []>} : vector<8x20x128xbf16>, vector<128x32xbf16>, vector<8x20x32xf32> -> vector<8x20x32xf32>
    %9 = vector.extract_strided_slice %8 {offsets = [0, 0, 0], sizes = [8, 16, 32], strides = [1, 1, 1]} : vector<8x20x32xf32> to vector<8x16x32xf32>
    %10 = arith.truncf %9 : vector<8x16x32xf32> to vector<8x16x32xbf16>
    %c0_4 = arith.constant 0 : index
    %c0_5 = arith.constant 0 : index
    %c0_6 = arith.constant 0 : index
    %11 = vector.load %arg3[%c0_4, %c0_5, %c0_6] : memref<5x32x128xbf16, #tpu.memory_space<vmem>>, vector<1x32x128xbf16>
    %12 = vector.shape_cast %11 : vector<1x32x128xbf16> to vector<32x128xbf16>
    %cst_7 = arith.constant dense<0.000000e+00> : vector<8x16x128xf32>
    %13 = tpu.matmul %10, %12, %cst_7 {dimension_numbers = #tpu.dot_dimension_numbers<[2], [0], [0, 1], [1], [0, 0, 0, 1, 1, 1], [], []>} : vector<8x16x32xbf16>, vector<32x128xbf16>, vector<8x16x128xf32> -> vector<8x16x128xf32>
    %14 = vector.extract_strided_slice %8 {offsets = [0, 1, 0], sizes = [8, 16, 32], strides = [1, 1, 1]} : vector<8x20x32xf32> to vector<8x16x32xf32>
    %15 = arith.truncf %14 : vector<8x16x32xf32> to vector<8x16x32xbf16>
    %c1 = arith.constant 1 : index
    %c0_8 = arith.constant 0 : index
    %c0_9 = arith.constant 0 : index
    %16 = vector.load %arg3[%c1, %c0_8, %c0_9] : memref<5x32x128xbf16, #tpu.memory_space<vmem>>, vector<1x32x128xbf16>
    %17 = vector.shape_cast %16 : vector<1x32x128xbf16> to vector<32x128xbf16>
    %cst_10 = arith.constant dense<0.000000e+00> : vector<8x16x128xf32>
    %18 = tpu.matmul %15, %17, %cst_10 {dimension_numbers = #tpu.dot_dimension_numbers<[2], [0], [0, 1], [1], [0, 0, 0, 1, 1, 1], [], []>} : vector<8x16x32xbf16>, vector<32x128xbf16>, vector<8x16x128xf32> -> vector<8x16x128xf32>
    %19 = arith.addf %13, %18 : vector<8x16x128xf32>
    %20 = vector.extract_strided_slice %8 {offsets = [0, 2, 0], sizes = [8, 16, 32], strides = [1, 1, 1]} : vector<8x20x32xf32> to vector<8x16x32xf32>
    %21 = arith.truncf %20 : vector<8x16x32xf32> to vector<8x16x32xbf16>
    %c2 = arith.constant 2 : index
    %c0_11 = arith.constant 0 : index
    %c0_12 = arith.constant 0 : index
    %22 = vector.load %arg3[%c2, %c0_11, %c0_12] : memref<5x32x128xbf16, #tpu.memory_space<vmem>>, vector<1x32x128xbf16>
    %23 = vector.shape_cast %22 : vector<1x32x128xbf16> to vector<32x128xbf16>
    %cst_13 = arith.constant dense<0.000000e+00> : vector<8x16x128xf32>
    %24 = tpu.matmul %21, %23, %cst_13 {dimension_numbers = #tpu.dot_dimension_numbers<[2], [0], [0, 1], [1], [0, 0, 0, 1, 1, 1], [], []>} : vector<8x16x32xbf16>, vector<32x128xbf16>, vector<8x16x128xf32> -> vector<8x16x128xf32>
    %25 = arith.addf %19, %24 : vector<8x16x128xf32>
    %26 = vector.extract_strided_slice %8 {offsets = [0, 3, 0], sizes = [8, 16, 32], strides = [1, 1, 1]} : vector<8x20x32xf32> to vector<8x16x32xf32>
    %27 = arith.truncf %26 : vector<8x16x32xf32> to vector<8x16x32xbf16>
    %c3 = arith.constant 3 : index
    %c0_14 = arith.constant 0 : index
    %c0_15 = arith.constant 0 : index
    %28 = vector.load %arg3[%c3, %c0_14, %c0_15] : memref<5x32x128xbf16, #tpu.memory_space<vmem>>, vector<1x32x128xbf16>
    %29 = vector.shape_cast %28 : vector<1x32x128xbf16> to vector<32x128xbf16>
    %cst_16 = arith.constant dense<0.000000e+00> : vector<8x16x128xf32>
    %30 = tpu.matmul %27, %29, %cst_16 {dimension_numbers = #tpu.dot_dimension_numbers<[2], [0], [0, 1], [1], [0, 0, 0, 1, 1, 1], [], []>} : vector<8x16x32xbf16>, vector<32x128xbf16>, vector<8x16x128xf32> -> vector<8x16x128xf32>
    %31 = arith.addf %25, %30 : vector<8x16x128xf32>
    %32 = vector.extract_strided_slice %8 {offsets = [0, 4, 0], sizes = [8, 16, 32], strides = [1, 1, 1]} : vector<8x20x32xf32> to vector<8x16x32xf32>
    %33 = arith.truncf %32 : vector<8x16x32xf32> to vector<8x16x32xbf16>
    %c4 = arith.constant 4 : index
    %c0_17 = arith.constant 0 : index
    %c0_18 = arith.constant 0 : index
    %34 = vector.load %arg3[%c4, %c0_17, %c0_18] : memref<5x32x128xbf16, #tpu.memory_space<vmem>>, vector<1x32x128xbf16>
    %35 = vector.shape_cast %34 : vector<1x32x128xbf16> to vector<32x128xbf16>
    %cst_19 = arith.constant dense<0.000000e+00> : vector<8x16x128xf32>
    %36 = tpu.matmul %33, %35, %cst_19 {dimension_numbers = #tpu.dot_dimension_numbers<[2], [0], [0, 1], [1], [0, 0, 0, 1, 1, 1], [], []>} : vector<8x16x32xbf16>, vector<32x128xbf16>, vector<8x16x128xf32> -> vector<8x16x128xf32>
    %37 = arith.addf %31, %36 : vector<8x16x128xf32>
    %c0_20 = arith.constant 0 : index
    %c0_21 = arith.constant 0 : index
    %38 = vector.load %arg4[%c0_20, %c0_21] : memref<1x128xf32, #tpu.memory_space<vmem>>, vector<1x128xf32>
    %39 = vector.shape_cast %38 : vector<1x128xf32> to vector<1x1x128xf32>
    %40 = vector.broadcast %39 : vector<1x1x128xf32> to vector<8x16x128xf32>
    %41 = arith.addf %37, %40 : vector<8x16x128xf32>
    %cst_22 = arith.constant 0.000000e+00 : f32
    %42 = vector.broadcast %cst_22 : f32 to vector<8x16x128xf32>
    %43 = arith.maximumf %41, %42 : vector<8x16x128xf32>
    %c0_23 = arith.constant 0 : index
    %c0_24 = arith.constant 0 : index
    %44 = vector.load %arg5[%c0_23, %c0_24] : memref<16x128xf32, #tpu.memory_space<vmem>>, vector<16x128xf32>
    %cst_25 = arith.constant 5.000000e-01 : f32
    %45 = vector.broadcast %cst_25 : f32 to vector<16x128xf32>
    %46 = arith.cmpf ogt, %44, %45 : vector<16x128xf32>
    %cst_26 = arith.constant 0xFF800000 : f32
    %47 = vector.shape_cast %46 : vector<16x128xi1> to vector<1x16x128xi1>
    %48 = vector.broadcast %47 : vector<1x16x128xi1> to vector<8x16x128xi1>
    %49 = vector.broadcast %cst_26 : f32 to vector<8x16x128xf32>
    %50 = arith.select %48, %43, %49 : vector<8x16x128xi1>, vector<8x16x128xf32>
    %cst_27 = arith.constant dense<0xFF800000> : vector<8x128xf32>
    %51 = vector.multi_reduction <maximumf>, %50, %cst_27 [1] : vector<8x16x128xf32> to vector<8x128xf32>
    %52 = arith.truncf %51 : vector<8x128xf32> to vector<8x128xbf16>
    %c0_28 = arith.constant 0 : index
    %c0_29 = arith.constant 0 : index
    %53 = vector.load %arg6[%c0_28, %c0_29] : memref<128x128xbf16, #tpu.memory_space<vmem>>, vector<128x128xbf16>
    %cst_30 = arith.constant dense<0.000000e+00> : vector<8x128xf32>
    %54 = tpu.matmul %52, %53, %cst_30 {dimension_numbers = #tpu.dot_dimension_numbers<[1], [0], [0], [1], [0, 0, 1, 1], [], []>} : vector<8x128xbf16>, vector<128x128xbf16>, vector<8x128xf32> -> vector<8x128xf32>
    %c0_31 = arith.constant 0 : index
    %c0_32 = arith.constant 0 : index
    %55 = vector.load %arg7[%c0_31, %c0_32] : memref<1x128xf32, #tpu.memory_space<vmem>>, vector<1x128xf32>
    %56 = vector.broadcast %55 : vector<1x128xf32> to vector<8x128xf32>
    %57 = arith.addf %54, %56 : vector<8x128xf32>
    %c0_33 = arith.constant 0 : index
    %c0_34 = arith.constant 0 : index
    %58 = vector.load %arg8[%c0_33, %c0_34] : memref<8x128xf32, #tpu.memory_space<vmem>>, vector<8x128xf32>
    tpu.vector_store %arg8[%c0_33, %c0_34], %57 {strides = array<i32>} : memref<8x128xf32, #tpu.memory_space<vmem>>, vector<8x128xf32>,
    return
  }
  func.func @transform_0(%arg0: i32) -> (i32, i32, i32) {
    %c0_i32 = arith.constant 0 : i32
    %c0_i32_0 = arith.constant 0 : i32
    %c0_i32_1 = arith.constant 0 : i32
    return %arg0, %c0_i32, %c0_i32_0 : i32, i32, i32
  }
  func.func @transform_1(%arg0: i32) -> (i32, i32) {
    %c0_i32 = arith.constant 0 : i32
    %c0_i32_0 = arith.constant 0 : i32
    %c0_i32_1 = arith.constant 0 : i32
    return %c0_i32, %c0_i32_0 : i32, i32
  }
  func.func @transform_2(%arg0: i32) -> (i32, i32, i32) {
    %c0_i32 = arith.constant 0 : i32
    %c0_i32_0 = arith.constant 0 : i32
    %c0_i32_1 = arith.constant 0 : i32
    %c0_i32_2 = arith.constant 0 : i32
    return %c0_i32, %c0_i32_0, %c0_i32_1 : i32, i32, i32
  }
  func.func @transform_3(%arg0: i32) -> (i32, i32) {
    %c0_i32 = arith.constant 0 : i32
    %c0_i32_0 = arith.constant 0 : i32
    %c0_i32_1 = arith.constant 0 : i32
    return %c0_i32, %c0_i32_0 : i32, i32
  }
  func.func @transform_4(%arg0: i32) -> (i32, i32) {
    %c0_i32 = arith.constant 0 : i32
    %c0_i32_0 = arith.constant 0 : i32
    %c0_i32_1 = arith.constant 0 : i32
    return %c0_i32, %c0_i32_0 : i32, i32
  }
  func.func @transform_5(%arg0: i32) -> (i32, i32) {
    %c0_i32 = arith.constant 0 : i32
    %c0_i32_0 = arith.constant 0 : i32
    %c0_i32_1 = arith.constant 0 : i32
    return %c0_i32, %c0_i32_0 : i32, i32
  }
  func.func @transform_6(%arg0: i32) -> (i32, i32) {
    %c0_i32 = arith.constant 0 : i32
    %c0_i32_0 = arith.constant 0 : i32
    %c0_i32_1 = arith.constant 0 : i32
    return %c0_i32, %c0_i32_0 : i32, i32
  }
  func.func @transform_7(%arg0: i32) -> (i32, i32) {
    %c0_i32 = arith.constant 0 : i32
    %c0_i32_0 = arith.constant 0 : i32
    return %arg0, %c0_i32 : i32, i32
  }
}

</mosaic_0001>

<llo_original>
// kernel: tpu_custom_call.1
$region0: #{tpu_custom_call.1}
  #allocation0 [shape = 'u32[]', space=smem, size = 0x4, offset = 0x4, fixed_abs, tag = 'smem constant byte address 0x4 - core index']
  #allocation1 [shape = 'u32[144,128]{1,0:T(1,128)}', space=vmem, size = 0x12000, scoped, tag = 'internal scratch']
  %s0 = inlined_call_operand.vmem [shape: s32[16,20,1], index: 0, kind: input, shape index: {}]
  %s1 = inlined_call_operand.vmem [shape: bf16[128,32], index: 1, kind: input, shape index: {}]
  %s2 = inlined_call_operand.vmem [shape: bf16[5,32,128], index: 2, kind: input, shape index: {}]
  %s3 = inlined_call_operand.vmem [shape: f32[1,128], index: 3, kind: input, shape index: {}]
  %s4 = inlined_call_operand.vmem [shape: f32[16,128], index: 4, kind: input, shape index: {}]
  %s5 = inlined_call_operand.vmem [shape: bf16[128,128], index: 5, kind: input, shape index: {}]
  %s6 = inlined_call_operand.vmem [shape: f32[1,128], index: 6, kind: input, shape index: {}]
  %s7 = inlined_call_operand.hbm [shape: f32[16,128], index: 7, kind: output, shape index: {}]
  %s8 = sld [smem:[#allocation0]]
  $region61: #{tpu_custom_call.1} parent=0
    _
  %s10 = ssub.s32 1, %s8
  %s11 = scalar_select 0, %s10, %s8
  $region1: #{tpu_custom_call.1} parent=0
    #allocation2 [shape = 'u8[8192]{0}', space=vmem, size = 0x2000, scoped, tag = 'output window, operand 0']
    #allocation3 [shape = 's32[2]{0}', space=sflag, size = 0x8, scoped, tag = 'scoped memory for tpu_custom_call.1']
    %12 = vsyncpa [#allocation3], 0
    %s13 = scalar_lea.sflag [#allocation3], 1
    %14 = vsyncpa %s13, 0
    loop: start=0, step=1, limit=4
    $region2: #{tpu_custom_call.1} parent=1 // loop_pre_header
      _
    $region3: #{tpu_custom_call.1} parent=1 // loop_header
      %s16 = sphi 0, %s20
      %p17 = scmp.ge.s32.totalorder %s16, 4
      %s26 = sphi 0, %s28
      %s29 = sphi 0, %s26
      %s30 = sphi 0, %s29
      %s46 = sphi 0, %s30
      %s50 = sphi 0, %s50
      %s52 = sphi 0, %s50
      %s53 = sphi 0, %s52
      %s67 = sphi 0, %s53
      %s71 = sphi 0, %s71
      %s73 = sphi 0, %s71
      %s74 = sphi 0, %s73
      %s88 = sphi 0, %s74
      %s92 = sphi 0, %s92
      %s94 = sphi 0, %s92
      %s95 = sphi 0, %s94
      %s109 = sphi 0, %s95
      %s113 = sphi 0, %s113
      %s115 = sphi 0, %s113
      %s116 = sphi 0, %s115
      %s130 = sphi 0, %s116
      %s134 = sphi 0, %s134
      %s136 = sphi 0, %s134
      %s137 = sphi 0, %s136
      %s151 = sphi 0, %s137
      %s155 = sphi 0, %s155
      %s157 = sphi 0, %s155
      %s158 = sphi 0, %s157
      %s172 = sphi 0, %s158
      %s178 = sphi 0, %s180
      %s181 = sphi 0, %s178
      %s182 = sphi 0, %s181
      %s198 = sphi 0, %s182
    $region4: #{tpu_custom_call.1} parent=1 // loop_header_branch
      %19 = sbr.rel (%p17) target = $region8
    $region5: #{tpu_custom_call.1} parent=1 // loop_body
      %s21 = ssub.s32 %s16, 1
      %s22 = ssub.s32 %s16, 2
      %s23 = sadd.s32 %s16, 1
      %s24 = ssub.s32 %s16, %s23
      %p25 = scmp.eq.s32.totalorder %s24, 0
      %s27 = sadd.s32 %s26, 1
      %s28 = scalar_select %p25, %s26, %s27
      %p31 = pneg %p25
      %p32 = scmp.eq.s32.totalorder %s16, 1
      %p33 = por %p31, %p32
      %p34 = scmp.ne.s32.totalorder %s26, %s29
      %p35 = scmp.eq.s32.totalorder %s16, 0
      %p36 = por %p34, %p35
      %p37 = scmp.ne.s32.totalorder %s26, %s29
      %p38 = scmp.eq.s32.totalorder %s21, 1
      %p39 = por %p37, %p38
      %p40 = scmp.ne.s32.totalorder %s29, %s30
      %p41 = scmp.eq.s32.totalorder %s21, 0
      %p42 = por %p40, %p41
      %p43 = scmp.ne.s32.totalorder %s29, %s30
      %p44 = scmp.eq.s32.totalorder %s22, 1
      %p45 = por %p43, %p44
      %p47 = scmp.ne.s32.totalorder %s30, %s46
      %p48 = scmp.eq.s32.totalorder %s22, 0
      %p49 = por %p47, %p48
      %s51 = sadd.s32 %s50, 1
      %p54 = scmp.eq.s32.totalorder %s16, 1
      %p55 = scmp.ne.s32.totalorder %s50, %s52
      %p56 = scmp.eq.s32.totalorder %s16, 0
      %p57 = por %p55, %p56
      %p58 = scmp.ne.s32.totalorder %s50, %s52
      %p59 = scmp.eq.s32.totalorder %s21, 1
      %p60 = por %p58, %p59
      %p61 = scmp.ne.s32.totalorder %s52, %s53
      %p62 = scmp.eq.s32.totalorder %s21, 0
      %p63 = por %p61, %p62
      %p64 = scmp.ne.s32.totalorder %s52, %s53
      %p65 = scmp.eq.s32.totalorder %s22, 1
      %p66 = por %p64, %p65
      %p68 = scmp.ne.s32.totalorder %s53, %s67
      %p69 = scmp.eq.s32.totalorder %s22, 0
      %p70 = por %p68, %p69
      %s72 = sadd.s32 %s71, 1
      %p75 = scmp.eq.s32.totalorder %s16, 1
      %p76 = scmp.ne.s32.totalorder %s71, %s73
      %p77 = scmp.eq.s32.totalorder %s16, 0
      %p78 = por %p76, %p77
      %p79 = scmp.ne.s32.totalorder %s71, %s73
      %p80 = scmp.eq.s32.totalorder %s21, 1
      %p81 = por %p79, %p80
      %p82 = scmp.ne.s32.totalorder %s73, %s74
      %p83 = scmp.eq.s32.totalorder %s21, 0
      %p84 = por %p82, %p83
      %p85 = scmp.ne.s32.totalorder %s73, %s74
      %p86 = scmp.eq.s32.totalorder %s22, 1
      %p87 = por %p85, %p86
      %p89 = scmp.ne.s32.totalorder %s74, %s88
      %p90 = scmp.eq.s32.totalorder %s22, 0
      %p91 = por %p89, %p90
      %s93 = sadd.s32 %s92, 1
      %p96 = scmp.eq.s32.totalorder %s16, 1
      %p97 = scmp.ne.s32.totalorder %s92, %s94
      %p98 = scmp.eq.s32.totalorder %s16, 0
      %p99 = por %p97, %p98
      %p100 = scmp.ne.s32.totalorder %s92, %s94
      %p101 = scmp.eq.s32.totalorder %s21, 1
      %p102 = por %p100, %p101
      %p103 = scmp.ne.s32.totalorder %s94, %s95
      %p104 = scmp.eq.s32.totalorder %s21, 0
      %p105 = por %p103, %p104
      %p106 = scmp.ne.s32.totalorder %s94, %s95
      %p107 = scmp.eq.s32.totalorder %s22, 1
      %p108 = por %p106, %p107
      %p110 = scmp.ne.s32.totalorder %s95, %s109
      %p111 = scmp.eq.s32.totalorder %s22, 0
      %p112 = por %p110, %p111
      %s114 = sadd.s32 %s113, 1
      %p117 = scmp.eq.s32.totalorder %s16, 1
      %p118 = scmp.ne.s32.totalorder %s113, %s115
      %p119 = scmp.eq.s32.totalorder %s16, 0
      %p120 = por %p118, %p119
      %p121 = scmp.ne.s32.totalorder %s113, %s115
      %p122 = scmp.eq.s32.totalorder %s21, 1
      %p123 = por %p121, %p122
      %p124 = scmp.ne.s32.totalorder %s115, %s116
      %p125 = scmp.eq.s32.totalorder %s21, 0
      %p126 = por %p124, %p125
      %p127 = scmp.ne.s32.totalorder %s115, %s116
      %p128 = scmp.eq.s32.totalorder %s22, 1
      %p129 = por %p127, %p128
      %p131 = scmp.ne.s32.totalorder %s116, %s130
      %p132 = scmp.eq.s32.totalorder %s22, 0
      %p133 = por %p131, %p132
      %s135 = sadd.s32 %s134, 1
      %p138 = scmp.eq.s32.totalorder %s16, 1
      %p139 = scmp.ne.s32.totalorder %s134, %s136
      %p140 = scmp.eq.s32.totalorder %s16, 0
      %p141 = por %p139, %p140
      %p142 = scmp.ne.s32.totalorder %s134, %s136
      %p143 = scmp.eq.s32.totalorder %s21, 1
      %p144 = por %p142, %p143
      %p145 = scmp.ne.s32.totalorder %s136, %s137
      %p146 = scmp.eq.s32.totalorder %s21, 0
      %p147 = por %p145, %p146
      %p148 = scmp.ne.s32.totalorder %s136, %s137
      %p149 = scmp.eq.s32.totalorder %s22, 1
      %p150 = por %p148, %p149
      %p152 = scmp.ne.s32.totalorder %s137, %s151
      %p153 = scmp.eq.s32.totalorder %s22, 0
      %p154 = por %p152, %p153
      %s156 = sadd.s32 %s155, 1
      %p159 = scmp.eq.s32.totalorder %s16, 1
      %p160 = scmp.ne.s32.totalorder %s155, %s157
      %p161 = scmp.eq.s32.totalorder %s16, 0
      %p162 = por %p160, %p161
      %p163 = scmp.ne.s32.totalorder %s155, %s157
      %p164 = scmp.eq.s32.totalorder %s21, 1
      %p165 = por %p163, %p164
      %p166 = scmp.ne.s32.totalorder %s157, %s158
      %p167 = scmp.eq.s32.totalorder %s21, 0
      %p168 = por %p166, %p167
      %p169 = scmp.ne.s32.totalorder %s157, %s158
      %p170 = scmp.eq.s32.totalorder %s22, 1
      %p171 = por %p169, %p170
      %p173 = scmp.ne.s32.totalorder %s158, %s172
      %p174 = scmp.eq.s32.totalorder %s22, 0
      %p175 = por %p173, %p174
      %s176 = ssub.s32 %s16, %s23
      %p177 = scmp.eq.s32.totalorder %s176, 0
      %s179 = sadd.s32 %s178, 1
      %s180 = scalar_select %p177, %s178, %s179
      %p183 = pneg %p177
      %p184 = scmp.eq.s32.totalorder %s16, 1
      %p185 = por %p183, %p184
      %p186 = scmp.ne.s32.totalorder %s178, %s181
      %p187 = scmp.eq.s32.totalorder %s16, 0
      %p188 = por %p186, %p187
      %p189 = scmp.ne.s32.totalorder %s178, %s181
      %p190 = scmp.eq.s32.totalorder %s21, 1
      %p191 = por %p189, %p190
      %p192 = scmp.ne.s32.totalorder %s181, %s182
      %p193 = scmp.eq.s32.totalorder %s21, 0
      %p194 = por %p192, %p193
      %p195 = scmp.ne.s32.totalorder %s181, %s182
      %p196 = scmp.eq.s32.totalorder %s22, 1
      %p197 = por %p195, %p196
      %p199 = scmp.ne.s32.totalorder %s182, %s198
      %p200 = scmp.eq.s32.totalorder %s22, 0
      %p201 = por %p199, %p200
      %p202 = scmp.le.s32.totalorder 1, %s16
      %p203 = scmp.lt.s32.totalorder %s16, 3
      %p204 = pnand %p202, %p203
      %p205 = pneg %p204
      // Predicated region
      $region9: #{tpu_custom_call.1} parent=5 // pred_check
        _
      $region10: #{tpu_custom_call.1} parent=5 // pred_check_branch
        %207 = sbr.rel (%p204) target = $region12
      $region11: #{tpu_custom_call.1} parent=5 // pred_region
        %s208 = ssub.s32 %s16, 1
        // Predicated region
        $region13: #{tpu_custom_call.1} parent=11 // pred_check
          %p209 = pneg %p63
        $region14: #{tpu_custom_call.1} parent=11 // pred_check_branch
          %211 = sbr.rel (%p209) target = $region16
        $region15: #{tpu_custom_call.1} parent=11 // pred_region
          _
        $region16: #{tpu_custom_call.1} parent=11 // pred_fallthru
          _
        // Predicated region
        $region17: #{tpu_custom_call.1} parent=11 // pred_check
          %p212 = pneg %p84
        $region18: #{tpu_custom_call.1} parent=11 // pred_check_branch
          %214 = sbr.rel (%p212) target = $region20
        $region19: #{tpu_custom_call.1} parent=11 // pred_region
          _
        $region20: #{tpu_custom_call.1} parent=11 // pred_fallthru
          _
        // Predicated region
        $region21: #{tpu_custom_call.1} parent=11 // pred_check
          %p215 = pneg %p105
        $region22: #{tpu_custom_call.1} parent=11 // pred_check_branch
          %217 = sbr.rel (%p215) target = $region24
        $region23: #{tpu_custom_call.1} parent=11 // pred_region
          _
        $region24: #{tpu_custom_call.1} parent=11 // pred_fallthru
          _
        // Predicated region
        $region25: #{tpu_custom_call.1} parent=11 // pred_check
          %p218 = pneg %p126
        $region26: #{tpu_custom_call.1} parent=11 // pred_check_branch
          %220 = sbr.rel (%p218) target = $region28
        $region27: #{tpu_custom_call.1} parent=11 // pred_region
          _
        $region28: #{tpu_custom_call.1} parent=11 // pred_fallthru
          _
        // Predicated region
        $region29: #{tpu_custom_call.1} parent=11 // pred_check
          %p221 = pneg %p147
        $region30: #{tpu_custom_call.1} parent=11 // pred_check_branch
          %223 = sbr.rel (%p221) target = $region32
        $region31: #{tpu_custom_call.1} parent=11 // pred_region
          _
        $region32: #{tpu_custom_call.1} parent=11 // pred_fallthru
          _
        // Predicated region
        $region33: #{tpu_custom_call.1} parent=11 // pred_check
          %p224 = pneg %p168
        $region34: #{tpu_custom_call.1} parent=11 // pred_check_branch
          %226 = sbr.rel (%p224) target = $region36
        $region35: #{tpu_custom_call.1} parent=11 // pred_region
          _
        $region36: #{tpu_custom_call.1} parent=11 // pred_fallthru
          _
      $region12: #{tpu_custom_call.1} parent=5 // pred_fallthru
        _
      %p227 = scmp.lt.s32.totalorder %s16, 2
      // Predicated region
      $region37: #{tpu_custom_call.1} parent=5 // pred_check
        %p228 = pneg %p227
      $region38: #{tpu_custom_call.1} parent=5 // pred_check_branch
        %230 = sbr.rel (%p228) target = $region40
      $region39: #{tpu_custom_call.1} parent=5 // pred_region
        // Predicated region
        $region41: #{tpu_custom_call.1} parent=39 // pred_check
          %p231 = pneg %p36
        $region42: #{tpu_custom_call.1} parent=39 // pred_check_branch
          %233 = sbr.rel (%p231) target = $region44
        $region43: #{tpu_custom_call.1} parent=39 // pred_region
          %s234 = smul.u32 8, %s16
          %p235 = scmp.lt.s32.totalorder %s234, 15
          %s236 = scalar_select %p235, %s234, 15
          %s237 = smul.addr %s236, 3
          %s238 = smul.addr %s237, 8
          %s239 = scalar_lea.vmem %s0, %s238
          %s240 = smul.u32 8, %s16
        $region44: #{tpu_custom_call.1} parent=39 // pred_fallthru
          _
      $region40: #{tpu_custom_call.1} parent=5 // pred_fallthru
        _
      %p241 = scmp.le.s32.totalorder 1, %s16
      %p242 = scmp.lt.s32.totalorder %s16, 3
      %p243 = pnand %p241, %p242
      %p244 = pneg %p243
      // Predicated region
      $region45: #{tpu_custom_call.1} parent=5 // pred_check
        _
      $region46: #{tpu_custom_call.1} parent=5 // pred_check_branch
        %246 = sbr.rel (%p243) target = $region48
      $region47: #{tpu_custom_call.1} parent=5 // pred_region
        %s247 = ssub.s32 %s16, 1
        %s248 = smul.u32 8, %s21
        %p249 = scmp.lt.s32.totalorder %s248, 15
        %s250 = scalar_select %p249, %s248, 15
        %s251 = smul.addr %s250, 3
        %s252 = smul.addr %s251, 8
        %s253 = scalar_lea.vmem %s0, %s252
        %p254 = pneg %p42
        %p255 = pneg %p39
        %p256 = pneg %p63
        %p257 = pneg %p60
        %p258 = pneg %p84
        %p259 = pneg %p81
        %p260 = pneg %p105
        %p261 = pneg %p102
        %p262 = pneg %p126
        %p263 = pneg %p123
        %p264 = pneg %p147
        %p265 = pneg %p144
        %p266 = pneg %p168
        %p267 = pneg %p165
        %p268 = pneg %p194
        %p269 = pneg %p191
        %s270 = sand.u32 %s181, 1
        %s271 = scalar_lea.sflag [#allocation3], %s270
        %s272 = sand.u32 %s181, 1
        %s273 = smul.addr %s272, 8
        %s274 = scalar_lea.vmem [#allocation2], %s273
        %s275 = smul.u32 8, %s21
        %p276 = scmp.lt.s32.totalorder %s275, 15
        %s277 = scalar_select %p276, %s275, 15
        %s278 = smul.addr %s277, 3
        %s279 = smul.addr %s278, 8
        %s280 = scalar_lea.vmem %s0, %s279
        %s281 = smul.u32 8, %s21
        %v283 = vld [vmem:[%s280] sm:$0xff]
        %v284 = vld [vmem:[%s280 + $0x8] sm:$0xff]
        %v285 = vld [vmem:[%s280 + $0x10] sm:$0xf]
        %v286 = vld [vmem:[%s280 + $0x18] sm:$0xff]
        %v287 = vld [vmem:[%s280 + $0x20] sm:$0xff]
        %v288 = vld [vmem:[%s280 + $0x28] sm:$0xf]
        %v289 = vld [vmem:[%s280 + $0x30] sm:$0xff]
        %v290 = vld [vmem:[%s280 + $0x38] sm:$0xff]
        %v291 = vld [vmem:[%s280 + $0x40] sm:$0xf]
        %v292 = vld [vmem:[%s280 + $0x48] sm:$0xff]
        %v293 = vld [vmem:[%s280 + $0x50] sm:$0xff]
        %v294 = vld [vmem:[%s280 + $0x58] sm:$0xf]
        %v295 = vld [vmem:[%s280 + $0x60] sm:$0xff]
        %v296 = vld [vmem:[%s280 + $0x68] sm:$0xff]
        %v297 = vld [vmem:[%s280 + $0x70] sm:$0xf]
        %v298 = vld [vmem:[%s280 + $0x78] sm:$0xff]
        %v299 = vld [vmem:[%s280 + $0x80] sm:$0xff]
        %v300 = vld [vmem:[%s280 + $0x88] sm:$0xf]
        %v301 = vld [vmem:[%s280 + $0x90] sm:$0xff]
        %v302 = vld [vmem:[%s280 + $0x98] sm:$0xff]
        %v303 = vld [vmem:[%s280 + $0xa0] sm:$0xf]
        %v304 = vld [vmem:[%s280 + $0xa8] sm:$0xff]
        %v305 = vld [vmem:[%s280 + $0xb0] sm:$0xff]
        %v306 = vld [vmem:[%s280 + $0xb8] sm:$0xf]
        %v307 = vlaneseq
        %v308 = vand.u32 %v307, 127
        %309 = vset.pattern.permute.xlu0 0
        %310 = vperm.xlu0 %309, %v283
        %v311 = vpop.permute.xlu0 %310
        %312 = vset.pattern.permute.xlu0 0
        %313 = vperm.xlu0 %312, %v284
        %v314 = vpop.permute.xlu0 %313
        %315 = vset.pattern.permute.xlu0 0
        %316 = vperm.xlu0 %315, %v285
        %v317 = vpop.permute.xlu0 %316
        %318 = vset.pattern.permute.xlu0 0
        %319 = vperm.xlu0 %318, %v286
        %v320 = vpop.permute.xlu0 %319
        %321 = vset.pattern.permute.xlu0 0
        %322 = vperm.xlu0 %321, %v287
        %v323 = vpop.permute.xlu0 %322
        %324 = vset.pattern.permute.xlu0 0
        %325 = vperm.xlu0 %324, %v288
        %v326 = vpop.permute.xlu0 %325
        %327 = vset.pattern.permute.xlu0 0
        %328 = vperm.xlu0 %327, %v289
        %v329 = vpop.permute.xlu0 %328
        %330 = vset.pattern.permute.xlu0 0
        %331 = vperm.xlu0 %330, %v290
        %v332 = vpop.permute.xlu0 %331
        %333 = vset.pattern.permute.xlu0 0
        %334 = vperm.xlu0 %333, %v291
        %v335 = vpop.permute.xlu0 %334
        %336 = vset.pattern.permute.xlu0 0
        %337 = vperm.xlu0 %336, %v292
        %v338 = vpop.permute.xlu0 %337
        %339 = vset.pattern.permute.xlu0 0
        %340 = vperm.xlu0 %339, %v293
        %v341 = vpop.permute.xlu0 %340
        %342 = vset.pattern.permute.xlu0 0
        %343 = vperm.xlu0 %342, %v294
        %v344 = vpop.permute.xlu0 %343
        %345 = vset.pattern.permute.xlu0 0
        %346 = vperm.xlu0 %345, %v295
        %v347 = vpop.permute.xlu0 %346
        %348 = vset.pattern.permute.xlu0 0
        %349 = vperm.xlu0 %348, %v296
        %v350 = vpop.permute.xlu0 %349
        %351 = vset.pattern.permute.xlu0 0
        %352 = vperm.xlu0 %351, %v297
        %v353 = vpop.permute.xlu0 %352
        %354 = vset.pattern.permute.xlu0 0
        %355 = vperm.xlu0 %354, %v298
        %v356 = vpop.permute.xlu0 %355
        %357 = vset.pattern.permute.xlu0 0
        %358 = vperm.xlu0 %357, %v299
        %v359 = vpop.permute.xlu0 %358
        %360 = vset.pattern.permute.xlu0 0
        %361 = vperm.xlu0 %360, %v300
        %v362 = vpop.permute.xlu0 %361
        %363 = vset.pattern.permute.xlu0 0
        %364 = vperm.xlu0 %363, %v301
        %v365 = vpop.permute.xlu0 %364
        %366 = vset.pattern.permute.xlu0 0
        %367 = vperm.xlu0 %366, %v302
        %v368 = vpop.permute.xlu0 %367
        %369 = vset.pattern.permute.xlu0 0
        %370 = vperm.xlu0 %369, %v303
        %v371 = vpop.permute.xlu0 %370
        %372 = vset.pattern.permute.xlu0 0
        %373 = vperm.xlu0 %372, %v304
        %v374 = vpop.permute.xlu0 %373
        %375 = vset.pattern.permute.xlu0 0
        %376 = vperm.xlu0 %375, %v305
        %v377 = vpop.permute.xlu0 %376
        %378 = vset.pattern.permute.xlu0 0
        %379 = vperm.xlu0 %378, %v306
        %v380 = vpop.permute.xlu0 %379
        %vm381 = vcmp.eq.s32.totalorder %v308, %v311
        %vm382 = vcmp.eq.s32.totalorder %v308, %v314
        %vm383 = vcmp.eq.s32.totalorder %v308, %v317
        %vm384 = vcmp.eq.s32.totalorder %v308, %v320
        %vm385 = vcmp.eq.s32.totalorder %v308, %v323
        %vm386 = vcmp.eq.s32.totalorder %v308, %v326
        %vm387 = vcmp.eq.s32.totalorder %v308, %v329
        %vm388 = vcmp.eq.s32.totalorder %v308, %v332
        %vm389 = vcmp.eq.s32.totalorder %v308, %v335
        %vm390 = vcmp.eq.s32.totalorder %v308, %v338
        %vm391 = vcmp.eq.s32.totalorder %v308, %v341
        %vm392 = vcmp.eq.s32.totalorder %v308, %v344
        %vm393 = vcmp.eq.s32.totalorder %v308, %v347
        %vm394 = vcmp.eq.s32.totalorder %v308, %v350
        %vm395 = vcmp.eq.s32.totalorder %v308, %v353
        %vm396 = vcmp.eq.s32.totalorder %v308, %v356
        %vm397 = vcmp.eq.s32.totalorder %v308, %v359
        %vm398 = vcmp.eq.s32.totalorder %v308, %v362
        %vm399 = vcmp.eq.s32.totalorder %v308, %v365
        %vm400 = vcmp.eq.s32.totalorder %v308, %v368
        %vm401 = vcmp.eq.s32.totalorder %v308, %v371
        %vm402 = vcmp.eq.s32.totalorder %v308, %v374
        %vm403 = vcmp.eq.s32.totalorder %v308, %v377
        %vm404 = vcmp.eq.s32.totalorder %v308, %v380
        %v405 = vsel %vm381, 1, 0
        %v406 = vsel %vm382, 1, 0
        %v407 = vsel %vm383, 1, 0
        %v408 = vsel %vm384, 1, 0
        %v409 = vsel %vm385, 1, 0
        %v410 = vsel %vm386, 1, 0
        %v411 = vsel %vm387, 1, 0
        %v412 = vsel %vm388, 1, 0
        %v413 = vsel %vm389, 1, 0
        %v414 = vsel %vm390, 1, 0
        %v415 = vsel %vm391, 1, 0
        %v416 = vsel %vm392, 1, 0
        %v417 = vsel %vm393, 1, 0
        %v418 = vsel %vm394, 1, 0
        %v419 = vsel %vm395, 1, 0
        %v420 = vsel %vm396, 1, 0
        %v421 = vsel %vm397, 1, 0
        %v422 = vsel %vm398, 1, 0
        %v423 = vsel %vm399, 1, 0
        %v424 = vsel %vm400, 1, 0
        %v425 = vsel %vm401, 1, 0
        %v426 = vsel %vm402, 1, 0
        %v427 = vsel %vm403, 1, 0
        %v428 = vsel %vm404, 1, 0
        %v429 = vcvt.s32.f32 %v405
        %v430 = vcvt.s32.f32 %v406
        %v431 = vcvt.s32.f32 %v407
        %v432 = vcvt.s32.f32 %v408
        %v433 = vcvt.s32.f32 %v409
        %v434 = vcvt.s32.f32 %v410
        %v435 = vcvt.s32.f32 %v411
        %v436 = vcvt.s32.f32 %v412
        %v437 = vcvt.s32.f32 %v413
        %v438 = vcvt.s32.f32 %v414
        %v439 = vcvt.s32.f32 %v415
        %v440 = vcvt.s32.f32 %v416
        %v441 = vcvt.s32.f32 %v417
        %v442 = vcvt.s32.f32 %v418
        %v443 = vcvt.s32.f32 %v419
        %v444 = vcvt.s32.f32 %v420
        %v445 = vcvt.s32.f32 %v421
        %v446 = vcvt.s32.f32 %v422
        %v447 = vcvt.s32.f32 %v423
        %v448 = vcvt.s32.f32 %v424
        %v449 = vcvt.s32.f32 %v425
        %v450 = vcvt.s32.f32 %v426
        %v451 = vcvt.s32.f32 %v427
        %v452 = vcvt.s32.f32 %v428
        %v453 = vpack.c.bf16 %v430, %v429
        %v454 = vpack.c.bf16 %v431, %v431
        %v455 = vpack.c.bf16 %v433, %v432
        %v456 = vpack.c.bf16 %v434, %v434
        %v457 = vpack.c.bf16 %v436, %v435
        %v458 = vpack.c.bf16 %v437, %v437
        %v459 = vpack.c.bf16 %v439, %v438
        %v460 = vpack.c.bf16 %v440, %v440
        %v461 = vpack.c.bf16 %v442, %v441
        %v462 = vpack.c.bf16 %v443, %v443
        %v463 = vpack.c.bf16 %v445, %v444
        %v464 = vpack.c.bf16 %v446, %v446
        %v465 = vpack.c.bf16 %v448, %v447
        %v466 = vpack.c.bf16 %v449, %v449
        %v467 = vpack.c.bf16 %v451, %v450
        %v468 = vpack.c.bf16 %v452, %v452
        %v469 = vld [vmem:[%s1] sm:$0xf]
        %v470 = vld [vmem:[%s1 + $0x4] sm:$0xf]
        %v471 = vld [vmem:[%s1 + $0x8] sm:$0xf]
        %v472 = vld [vmem:[%s1 + $0xc] sm:$0xf]
        %v473 = vld [vmem:[%s1 + $0x10] sm:$0xf]
        %v474 = vld [vmem:[%s1 + $0x14] sm:$0xf]
        %v475 = vld [vmem:[%s1 + $0x18] sm:$0xf]
        %v476 = vld [vmem:[%s1 + $0x1c] sm:$0xf]
        %v477 = vld [vmem:[%s1 + $0x20] sm:$0xf]
        %v478 = vld [vmem:[%s1 + $0x24] sm:$0xf]
        %v479 = vld [vmem:[%s1 + $0x28] sm:$0xf]
        %v480 = vld [vmem:[%s1 + $0x2c] sm:$0xf]
        %v481 = vld [vmem:[%s1 + $0x30] sm:$0xf]
        %v482 = vld [vmem:[%s1 + $0x34] sm:$0xf]
        %v483 = vld [vmem:[%s1 + $0x38] sm:$0xf]
        %v484 = vld [vmem:[%s1 + $0x3c] sm:$0xf]
        %v501 = vcombine.high %v453, %v453
        %v503 = vunpack.c.l.s4 1983009808
        %v504 = vunpack.c.0.s8 %v503
        %v505 = vlaneseq
        %v506 = vshrl.u32 %v505, 7
        %v507 = vsub.s32 %v504, %v506
        %v508 = vrot.slane %v453, %v507
        %v510 = vunpack.c.l.s4 1983009808
        %v511 = vunpack.c.0.s8 %v510
        %v512 = vlaneseq
        %v513 = vshrl.u32 %v512, 7
        %v514 = vsub.s32 %v511, %v513
        %v515 = vrot.slane %v501, %v514
        %v516 = vcombine.high %v508, %v508
        %v517 = vcombine.high %v515, %v515
        %v519 = vunpack.c.l.s4 1983009808
        %v520 = vunpack.c.0.s8 %v519
        %v521 = vlaneseq
        %v522 = vshrl.u32 %v521, 7
        %v523 = vsub.s32 %v520, %v522
        %v524 = vrot.slane %v454, %v523
        %v525 = vcombine.high %v455, %v455
        %v527 = vunpack.c.l.s4 1983009808
        %v528 = vunpack.c.0.s8 %v527
        %v529 = vlaneseq
        %v530 = vshrl.u32 %v529, 7
        %v531 = vsub.s32 %v528, %v530
        %v532 = vrot.slane %v455, %v531
        %v534 = vunpack.c.l.s4 1983009808
        %v535 = vunpack.c.0.s8 %v534
        %v536 = vlaneseq
        %v537 = vshrl.u32 %v536, 7
        %v538 = vsub.s32 %v535, %v537
        %v539 = vrot.slane %v525, %v538
        %v540 = vcombine.high %v532, %v532
        %v541 = vcombine.high %v539, %v539
        %v543 = vunpack.c.l.s4 1983009808
        %v544 = vunpack.c.0.s8 %v543
        %v545 = vlaneseq
        %v546 = vshrl.u32 %v545, 7
        %v547 = vsub.s32 %v544, %v546
        %v548 = vrot.slane %v456, %v547
        %v549 = vcombine.high %v457, %v457
        %v551 = vunpack.c.l.s4 1983009808
        %v552 = vunpack.c.0.s8 %v551
        %v553 = vlaneseq
        %v554 = vshrl.u32 %v553, 7
        %v555 = vsub.s32 %v552, %v554
        %v556 = vrot.slane %v457, %v555
        %v558 = vunpack.c.l.s4 1983009808
        %v559 = vunpack.c.0.s8 %v558
        %v560 = vlaneseq
        %v561 = vshrl.u32 %v560, 7
        %v562 = vsub.s32 %v559, %v561
        %v563 = vrot.slane %v549, %v562
        %v564 = vcombine.high %v556, %v556
        %v565 = vcombine.high %v563, %v563
        %v567 = vunpack.c.l.s4 1983009808
        %v568 = vunpack.c.0.s8 %v567
        %v569 = vlaneseq
        %v570 = vshrl.u32 %v569, 7
        %v571 = vsub.s32 %v568, %v570
        %v572 = vrot.slane %v458, %v571
        %v573 = vcombine.high %v459, %v459
        %v575 = vunpack.c.l.s4 1983009808
        %v576 = vunpack.c.0.s8 %v575
        %v577 = vlaneseq
        %v578 = vshrl.u32 %v577, 7
        %v579 = vsub.s32 %v576, %v578
        %v580 = vrot.slane %v459, %v579
        %v582 = vunpack.c.l.s4 1983009808
        %v583 = vunpack.c.0.s8 %v582
        %v584 = vlaneseq
        %v585 = vshrl.u32 %v584, 7
        %v586 = vsub.s32 %v583, %v585
        %v587 = vrot.slane %v573, %v586
        %v588 = vcombine.high %v580, %v580
        %v589 = vcombine.high %v587, %v587
        %v591 = vunpack.c.l.s4 1983009808
        %v592 = vunpack.c.0.s8 %v591
        %v593 = vlaneseq
        %v594 = vshrl.u32 %v593, 7
        %v595 = vsub.s32 %v592, %v594
        %v596 = vrot.slane %v460, %v595
        %v597 = vcombine.high %v461, %v461
        %v599 = vunpack.c.l.s4 1983009808
        %v600 = vunpack.c.0.s8 %v599
        %v601 = vlaneseq
        %v602 = vshrl.u32 %v601, 7
        %v603 = vsub.s32 %v600, %v602
        %v604 = vrot.slane %v461, %v603
        %v606 = vunpack.c.l.s4 1983009808
        %v607 = vunpack.c.0.s8 %v606
        %v608 = vlaneseq
        %v609 = vshrl.u32 %v608, 7
        %v610 = vsub.s32 %v607, %v609
        %v611 = vrot.slane %v597, %v610
        %v612 = vcombine.high %v604, %v604
        %v613 = vcombine.high %v611, %v611
        %v615 = vunpack.c.l.s4 1983009808
        %v616 = vunpack.c.0.s8 %v615
        %v617 = vlaneseq
        %v618 = vshrl.u32 %v617, 7
        %v619 = vsub.s32 %v616, %v618
        %v620 = vrot.slane %v462, %v619
        %v621 = vcombine.high %v463, %v463
        %v623 = vunpack.c.l.s4 1983009808
        %v624 = vunpack.c.0.s8 %v623
        %v625 = vlaneseq
        %v626 = vshrl.u32 %v625, 7
        %v627 = vsub.s32 %v624, %v626
        %v628 = vrot.slane %v463, %v627
        %v630 = vunpack.c.l.s4 1983009808
        %v631 = vunpack.c.0.s8 %v630
        %v632 = vlaneseq
        %v633 = vshrl.u32 %v632, 7
        %v634 = vsub.s32 %v631, %v633
        %v635 = vrot.slane %v621, %v634
        %v636 = vcombine.high %v628, %v628
        %v637 = vcombine.high %v635, %v635
        %v639 = vunpack.c.l.s4 1983009808
        %v640 = vunpack.c.0.s8 %v639
        %v641 = vlaneseq
        %v642 = vshrl.u32 %v641, 7
        %v643 = vsub.s32 %v640, %v642
        %v644 = vrot.slane %v464, %v643
        %v645 = vcombine.high %v465, %v465
        %v647 = vunpack.c.l.s4 1983009808
        %v648 = vunpack.c.0.s8 %v647
        %v649 = vlaneseq
        %v650 = vshrl.u32 %v649, 7
        %v651 = vsub.s32 %v648, %v650
        %v652 = vrot.slane %v465, %v651
        %v654 = vunpack.c.l.s4 1983009808
        %v655 = vunpack.c.0.s8 %v654
        %v656 = vlaneseq
        %v657 = vshrl.u32 %v656, 7
        %v658 = vsub.s32 %v655, %v657
        %v659 = vrot.slane %v645, %v658
        %v660 = vcombine.high %v652, %v652
        %v661 = vcombine.high %v659, %v659
        %v663 = vunpack.c.l.s4 1983009808
        %v664 = vunpack.c.0.s8 %v663
        %v665 = vlaneseq
        %v666 = vshrl.u32 %v665, 7
        %v667 = vsub.s32 %v664, %v666
        %v668 = vrot.slane %v466, %v667
        %v669 = vcombine.high %v467, %v467
        %v671 = vunpack.c.l.s4 1983009808
        %v672 = vunpack.c.0.s8 %v671
        %v673 = vlaneseq
        %v674 = vshrl.u32 %v673, 7
        %v675 = vsub.s32 %v672, %v674
        %v676 = vrot.slane %v467, %v675
        %v678 = vunpack.c.l.s4 1983009808
        %v679 = vunpack.c.0.s8 %v678
        %v680 = vlaneseq
        %v681 = vshrl.u32 %v680, 7
        %v682 = vsub.s32 %v679, %v681
        %v683 = vrot.slane %v669, %v682
        %v684 = vcombine.high %v676, %v676
        %v685 = vcombine.high %v683, %v683
        %v687 = vunpack.c.l.s4 1983009808
        %v688 = vunpack.c.0.s8 %v687
        %v689 = vlaneseq
        %v690 = vshrl.u32 %v689, 7
        %v691 = vsub.s32 %v688, %v690
        %v692 = vrot.slane %v468, %v691
        %v693 = vcombine.low %v508, %v516
        %v694 = vcombine.low %v515, %v517
        %v696 = vunpack.c.l.s4 1983009808
        %v697 = vunpack.c.0.s8 %v696
        %v698 = vlaneseq
        %v699 = vshrl.u32 %v698, 7
        %v700 = vsub.s32 %v697, %v699
        %v701 = vrot.slane %v693, %v700
        %v703 = vunpack.c.l.s4 1983009808
        %v704 = vunpack.c.0.s8 %v703
        %v705 = vlaneseq
        %v706 = vshrl.u32 %v705, 7
        %v707 = vsub.s32 %v704, %v706
        %v708 = vrot.slane %v694, %v707
        %v709 = vcombine.low %v701, %v708
        %v710 = vcombine.low %v524, %v532
        %v711 = vcombine.low %v540, %v539
        %v713 = vunpack.c.l.s4 1983009808
        %v714 = vunpack.c.0.s8 %v713
        %v715 = vlaneseq
        %v716 = vshrl.u32 %v715, 7
        %v717 = vsub.s32 %v714, %v716
        %v718 = vrot.slane %v710, %v717
        %v720 = vunpack.c.l.s4 1983009808
        %v721 = vunpack.c.0.s8 %v720
        %v722 = vlaneseq
        %v723 = vshrl.u32 %v722, 7
        %v724 = vsub.s32 %v721, %v723
        %v725 = vrot.slane %v711, %v724
        %v726 = vcombine.low %v718, %v725
        %v727 = vcombine.low %v541, %v548
        %v728 = vcombine.low %v556, %v564
        %v730 = vunpack.c.l.s4 1983009808
        %v731 = vunpack.c.0.s8 %v730
        %v732 = vlaneseq
        %v733 = vshrl.u32 %v732, 7
        %v734 = vsub.s32 %v731, %v733
        %v735 = vrot.slane %v727, %v734
        %v737 = vunpack.c.l.s4 1983009808
        %v738 = vunpack.c.0.s8 %v737
        %v739 = vlaneseq
        %v740 = vshrl.u32 %v739, 7
        %v741 = vsub.s32 %v738, %v740
        %v742 = vrot.slane %v728, %v741
        %v743 = vcombine.low %v735, %v742
        %v744 = vcombine.low %v563, %v565
        %v745 = vcombine.low %v572, %v580
        %v747 = vunpack.c.l.s4 1983009808
        %v748 = vunpack.c.0.s8 %v747
        %v749 = vlaneseq
        %v750 = vshrl.u32 %v749, 7
        %v751 = vsub.s32 %v748, %v750
        %v752 = vrot.slane %v744, %v751
        %v754 = vunpack.c.l.s4 1983009808
        %v755 = vunpack.c.0.s8 %v754
        %v756 = vlaneseq
        %v757 = vshrl.u32 %v756, 7
        %v758 = vsub.s32 %v755, %v757
        %v759 = vrot.slane %v745, %v758
        %v760 = vcombine.low %v752, %v759
        %v761 = vcombine.low %v588, %v587
        %v762 = vcombine.low %v589, %v596
        %v764 = vunpack.c.l.s4 1983009808
        %v765 = vunpack.c.0.s8 %v764
        %v766 = vlaneseq
        %v767 = vshrl.u32 %v766, 7
        %v768 = vsub.s32 %v765, %v767
        %v769 = vrot.slane %v761, %v768
        %v771 = vunpack.c.l.s4 1983009808
        %v772 = vunpack.c.0.s8 %v771
        %v773 = vlaneseq
        %v774 = vshrl.u32 %v773, 7
        %v775 = vsub.s32 %v772, %v774
        %v776 = vrot.slane %v762, %v775
        %v777 = vcombine.low %v769, %v776
        %v778 = vcombine.low %v604, %v612
        %v779 = vcombine.low %v611, %v613
        %v781 = vunpack.c.l.s4 1983009808
        %v782 = vunpack.c.0.s8 %v781
        %v783 = vlaneseq
        %v784 = vshrl.u32 %v783, 7
        %v785 = vsub.s32 %v782, %v784
        %v786 = vrot.slane %v778, %v785
        %v788 = vunpack.c.l.s4 1983009808
        %v789 = vunpack.c.0.s8 %v788
        %v790 = vlaneseq
        %v791 = vshrl.u32 %v790, 7
        %v792 = vsub.s32 %v789, %v791
        %v793 = vrot.slane %v779, %v792
        %v794 = vcombine.low %v786, %v793
        %v795 = vcombine.low %v620, %v628
        %v796 = vcombine.low %v636, %v635
        %v798 = vunpack.c.l.s4 1983009808
        %v799 = vunpack.c.0.s8 %v798
        %v800 = vlaneseq
        %v801 = vshrl.u32 %v800, 7
        %v802 = vsub.s32 %v799, %v801
        %v803 = vrot.slane %v795, %v802
        %v805 = vunpack.c.l.s4 1983009808
        %v806 = vunpack.c.0.s8 %v805
        %v807 = vlaneseq
        %v808 = vshrl.u32 %v807, 7
        %v809 = vsub.s32 %v806, %v808
        %v810 = vrot.slane %v796, %v809
        %v811 = vcombine.low %v803, %v810
        %v812 = vcombine.low %v637, %v644
        %v813 = vcombine.low %v652, %v660
        %v815 = vunpack.c.l.s4 1983009808
        %v816 = vunpack.c.0.s8 %v815
        %v817 = vlaneseq
        %v818 = vshrl.u32 %v817, 7
        %v819 = vsub.s32 %v816, %v818
        %v820 = vrot.slane %v812, %v819
        %v822 = vunpack.c.l.s4 1983009808
        %v823 = vunpack.c.0.s8 %v822
        %v824 = vlaneseq
        %v825 = vshrl.u32 %v824, 7
        %v826 = vsub.s32 %v823, %v825
        %v827 = vrot.slane %v813, %v826
        %v828 = vcombine.low %v820, %v827
        %v829 = vcombine.low %v659, %v661
        %v830 = vcombine.low %v668, %v676
        %v832 = vunpack.c.l.s4 1983009808
        %v833 = vunpack.c.0.s8 %v832
        %v834 = vlaneseq
        %v835 = vshrl.u32 %v834, 7
        %v836 = vsub.s32 %v833, %v835
        %v837 = vrot.slane %v829, %v836
        %v839 = vunpack.c.l.s4 1983009808
        %v840 = vunpack.c.0.s8 %v839
        %v841 = vlaneseq
        %v842 = vshrl.u32 %v841, 7
        %v843 = vsub.s32 %v840, %v842
        %v844 = vrot.slane %v830, %v843
        %v845 = vcombine.low %v837, %v844
        %v846 = vcombine.low %v684, %v683
        %v847 = vcombine.low %v685, %v692
        %v849 = vunpack.c.l.s4 1983009808
        %v850 = vunpack.c.0.s8 %v849
        %v851 = vlaneseq
        %v852 = vshrl.u32 %v851, 7
        %v853 = vsub.s32 %v850, %v852
        %v854 = vrot.slane %v846, %v853
        %v856 = vunpack.c.l.s4 1983009808
        %v857 = vunpack.c.0.s8 %v856
        %v858 = vlaneseq
        %v859 = vshrl.u32 %v858, 7
        %v860 = vsub.s32 %v857, %v859
        %v861 = vrot.slane %v847, %v860
        %v862 = vcombine.low %v854, %v861
        %v889 = vunpack.c.l.b16 %v469
        %v890 = vunpack.c.l.b16 %v470
        %v891 = vunpack.c.l.b16 %v471
        %v892 = vunpack.c.l.b16 %v472
        %v893 = vunpack.c.l.b16 %v473
        %v894 = vunpack.c.l.b16 %v474
        %v895 = vunpack.c.l.b16 %v475
        %v896 = vunpack.c.l.b16 %v476
        %v897 = vunpack.c.l.b16 %v477
        %v898 = vunpack.c.l.b16 %v478
        %v899 = vunpack.c.l.b16 %v479
        %v900 = vunpack.c.l.b16 %v480
        %v901 = vunpack.c.l.b16 %v481
        %v902 = vunpack.c.l.b16 %v482
        %v903 = vunpack.c.l.b16 %v483
        %v904 = vunpack.c.l.b16 %v484
        %v905 = vpack.c.b16 %v890, %v889
        %v906 = vpack.c.b16 %v892, %v891
        %v907 = vpack.c.b16 %v894, %v893
        %v908 = vpack.c.b16 %v896, %v895
        %v909 = vpack.c.b16 %v898, %v897
        %v910 = vpack.c.b16 %v900, %v899
        %v911 = vpack.c.b16 %v902, %v901
        %v912 = vpack.c.b16 %v904, %v903
        %921 = vmatprep.subr.bf16.mxu0 0
        %922 = vmatpush1.bf16.msra.mxu0 %v905
        %923 = vmatprep.subr.bf16.mxu0 0
        %924 = vmatpush1.bf16.msra.mxu0 %v906
        %925 = vmatprep.subr.bf16.mxu0 0
        %926 = vmatpush1.bf16.msra.mxu0 %v907
        %927 = vmatprep.subr.bf16.mxu0 0
        %928 = vmatpush1.bf16.msra.mxu0 %v908
        %929 = vmatprep.subr.bf16.mxu0 0
        %930 = vmatpush1.bf16.msra.mxu0 %v909
        %931 = vmatprep.subr.bf16.mxu0 0
        %932 = vmatpush1.bf16.msra.mxu0 %v910
        %933 = vmatprep.subr.bf16.mxu0 0
        %934 = vmatpush1.bf16.msra.mxu0 %v911
        %935 = vmatprep.subr.bf16.mxu0 0
        %936 = vmatpush1.bf16.msra.mxu0 %v912
        %937 = vmatprep.subr.bf16.mxu0 0
        %938 = vmatpush1.bf16.msra.mxu0 0
        %939 = vmatprep.subr.bf16.mxu0 0
        %940 = vmatpush1.bf16.msra.mxu0 0
        %941 = vmatprep.subr.bf16.mxu0 0
        %942 = vmatpush1.bf16.msra.mxu0 0
        %943 = vmatprep.subr.bf16.mxu0 0
        %944 = vmatpush1.bf16.msra.mxu0 0
        %945 = vmatprep.subr.bf16.mxu0 0
        %946 = vmatpush1.bf16.msra.mxu0 0
        %947 = vmatprep.subr.bf16.mxu0 0
        %948 = vmatpush1.bf16.msra.mxu0 0
        %949 = vmatprep.subr.bf16.mxu0 0
        %950 = vmatpush1.bf16.msra.mxu0 0
        %951 = vmatprep.subr.bf16.mxu0 0
        %952 = vmatpush1.bf16.msra.mxu0 0
        %953 = vmatprep.mubr.bf16.mxu0 0
        %954 = vmatmul.mubr.bf16.gmra.mrb[0].mxu0 %v709
        %v955 = vpop.f32.mrb[0].mxu0
        %v956 = vadd.f32 0.0, %v955
        %v957 = vpop.f32.mrb[0].mxu0
        %v958 = vpop.f32.mrb[0].mxu0
        %v959 = vadd.f32 0.0, %v958
        %v960 = vpop.f32.mrb[0].mxu0
        %961 = vmatprep.mubr.bf16.mxu0 0
        %962 = vmatmul.mubr.bf16.gmra.mrb[0].mxu0 %v726
        %v963 = vpop.f32.mrb[0].mxu0
        %v964 = vadd.f32 0.0, %v963
        %v965 = vpop.f32.mrb[0].mxu0
        %v966 = vpop.f32.mrb[0].mxu0
        %v967 = vadd.f32 0.0, %v966
        %v968 = vpop.f32.mrb[0].mxu0
        %969 = vmatprep.mubr.bf16.mxu0 0
        %970 = vmatmul.mubr.bf16.gmra.mrb[0].mxu0 %v743
        %v971 = vpop.f32.mrb[0].mxu0
        %v972 = vadd.f32 0.0, %v971
        %v973 = vpop.f32.mrb[0].mxu0
        %v974 = vpop.f32.mrb[0].mxu0
        %v975 = vadd.f32 0.0, %v974
        %v976 = vpop.f32.mrb[0].mxu0
        %977 = vmatprep.mubr.bf16.mxu0 0
        %978 = vmatmul.mubr.bf16.gmra.mrb[0].mxu0 %v760
        %v979 = vpop.f32.mrb[0].mxu0
        %v980 = vadd.f32 0.0, %v979
        %v981 = vpop.f32.mrb[0].mxu0
        %v982 = vpop.f32.mrb[0].mxu0
        %v983 = vadd.f32 0.0, %v982
        %v984 = vpop.f32.mrb[0].mxu0
        %985 = vmatprep.mubr.bf16.mxu0 0
        %986 = vmatmul.mubr.bf16.gmra.mrb[0].mxu0 %v777
        %v987 = vpop.f32.mrb[0].mxu0
        %v988 = vadd.f32 0.0, %v987
        %v989 = vpop.f32.mrb[0].mxu0
        %v990 = vpop.f32.mrb[0].mxu0
        %v991 = vadd.f32 0.0, %v990
        %v992 = vpop.f32.mrb[0].mxu0
        %993 = vmatprep.mubr.bf16.mxu0 0
        %994 = vmatmul.mubr.bf16.gmra.mrb[0].mxu0 %v794
        %v995 = vpop.f32.mrb[0].mxu0
        %v996 = vadd.f32 0.0, %v995
        %v997 = vpop.f32.mrb[0].mxu0
        %v998 = vpop.f32.mrb[0].mxu0
        %v999 = vadd.f32 0.0, %v998
        %v1000 = vpop.f32.mrb[0].mxu0
        %1001 = vmatprep.mubr.bf16.mxu0 0
        %1002 = vmatmul.mubr.bf16.gmra.mrb[0].mxu0 %v811
        %v1003 = vpop.f32.mrb[0].mxu0
        %v1004 = vadd.f32 0.0, %v1003
        %v1005 = vpop.f32.mrb[0].mxu0
        %v1006 = vpop.f32.mrb[0].mxu0
        %v1007 = vadd.f32 0.0, %v1006
        %v1008 = vpop.f32.mrb[0].mxu0
        %1009 = vmatprep.mubr.bf16.mxu0 0
        %1010 = vmatmul.mubr.bf16.gmra.mrb[0].mxu0 %v828
        %v1011 = vpop.f32.mrb[0].mxu0
        %v1012 = vadd.f32 0.0, %v1011
        %v1013 = vpop.f32.mrb[0].mxu0
        %v1014 = vpop.f32.mrb[0].mxu0
        %v1015 = vadd.f32 0.0, %v1014
        %v1016 = vpop.f32.mrb[0].mxu0
        %1017 = vmatprep.mubr.bf16.mxu0 0
        %1018 = vmatmul.mubr.bf16.gmra.mrb[0].mxu0 %v845
        %v1019 = vpop.f32.mrb[0].mxu0
        %v1020 = vadd.f32 0.0, %v1019
        %v1021 = vpop.f32.mrb[0].mxu0
        %v1022 = vpop.f32.mrb[0].mxu0
        %v1023 = vadd.f32 0.0, %v1022
        %v1024 = vpop.f32.mrb[0].mxu0
        %1025 = vmatprep.mubr.bf16.mxu0 0
        %1026 = vmatmul.mubr.bf16.gmra.mrb[0].mxu0 %v862
        %v1027 = vpop.f32.mrb[0].mxu0
        %v1028 = vadd.f32 0.0, %v1027
        %v1029 = vpop.f32.mrb[0].mxu0
        %v1030 = vpop.f32.mrb[0].mxu0
        %v1031 = vadd.f32 0.0, %v1030
        %v1032 = vpop.f32.mrb[0].mxu0
        %1033 = vdwg.mxu0
        %v1054 = vcombine.high %v956, %v956
        %v1055 = vcombine.high %v959, %v959
        %v1056 = vcombine.high %v964, %v964
        %v1057 = vcombine.high %v967, %v967
        %v1058 = vcombine.high %v972, %v972
        %v1059 = vcombine.high %v975, %v975
        %v1060 = vcombine.high %v980, %v980
        %v1061 = vcombine.high %v983, %v983
        %v1062 = vcombine.high %v988, %v988
        %v1063 = vcombine.high %v991, %v991
        %v1064 = vcombine.high %v996, %v996
        %v1065 = vcombine.high %v999, %v999
        %v1066 = vcombine.high %v1004, %v1004
        %v1067 = vcombine.high %v1007, %v1007
        %v1068 = vcombine.high %v1012, %v1012
        %v1069 = vcombine.high %v1015, %v1015
        %v1070 = vcombine.high %v1020, %v1020
        %v1071 = vcombine.high %v1023, %v1023
        %v1072 = vcombine.high %v1028, %v1028
        %v1073 = vcombine.high %v1031, %v1031
        %v1078 = vcombine.low %v956, %v1054
        %v1079 = vcombine.low %v959, %v1055
        %v1080 = vcombine.low %v1056, %v967
        %v1081 = vcombine.low %v1057, %v972
        %v1082 = vcombine.low %v975, %v1059
        %v1083 = vcombine.low %v980, %v1060
        %v1084 = vcombine.low %v1061, %v988
        %v1085 = vcombine.low %v1062, %v991
        %v1086 = vcombine.low %v996, %v1064
        %v1087 = vcombine.low %v999, %v1065
        %v1088 = vcombine.low %v1066, %v1007
        %v1089 = vcombine.low %v1067, %v1012
        %v1090 = vcombine.low %v1015, %v1069
        %v1091 = vcombine.low %v1020, %v1070
        %v1092 = vcombine.low %v1071, %v1028
        %v1093 = vcombine.low %v1072, %v1031
        %v1110 = vpack.c.bf16 %v1079, %v1078
        %v1111 = vpack.c.bf16 %v1081, %v1080
        %v1112 = vpack.c.bf16 %v1083, %v1082
        %v1113 = vpack.c.bf16 %v1085, %v1084
        %v1114 = vpack.c.bf16 %v1087, %v1086
        %v1115 = vpack.c.bf16 %v1089, %v1088
        %v1116 = vpack.c.bf16 %v1091, %v1090
        %v1117 = vpack.c.bf16 %v1093, %v1092
        %v1118 = vld [vmem:[%s2] sm:$0xf]
        %v1119 = vld [vmem:[%s2 + $0x4] sm:$0xf]
        %v1120 = vld [vmem:[%s2 + $0x8] sm:$0xf]
        %v1121 = vld [vmem:[%s2 + $0xc] sm:$0xf]
        %v1122 = vpack.c.bf16 %v964, %v964
        %v1123 = vpack.c.bf16 %v1058, %v1058
        %v1124 = vpack.c.bf16 %v983, %v983
        %v1125 = vpack.c.bf16 %v1063, %v1063
        %v1126 = vpack.c.bf16 %v1004, %v1004
        %v1127 = vpack.c.bf16 %v1068, %v1068
        %v1128 = vpack.c.bf16 %v1023, %v1023
        %v1129 = vpack.c.bf16 %v1073, %v1073
        %s1130 = scalar_lea.vmem %s2, 16
        %v1131 = vld [vmem:[%s1130] sm:$0xf]
        %v1132 = vld [vmem:[%s1130 + $0x4] sm:$0xf]
        %v1133 = vld [vmem:[%s1130 + $0x8] sm:$0xf]
        %v1134 = vld [vmem:[%s1130 + $0xc] sm:$0xf]
        %vm1135 = vsmask.f32 7424
        %v1137 = vshrl.u32 %v1110, 16
        %v1139 = vshll.u32 %v1110, 16
        %v1141 = vrot.slane %v1139, 1
        %v1142 = vor.u32 %v1137, %v1141
        %v1144 = vshll.u32 %v1122, 16
        %v1146 = vrot.slane %v1144, 1
        %v1147 = vsel %vm1135, %v1142, %v1146
        %v1149 = vshrl.u32 %v1111, 16
        %v1151 = vshll.u32 %v1111, 16
        %v1153 = vrot.slane %v1151, 1
        %v1154 = vor.u32 %v1149, %v1153
        %v1156 = vshll.u32 %v1123, 16
        %v1158 = vrot.slane %v1156, 1
        %v1159 = vsel %vm1135, %v1154, %v1158
        %v1161 = vshrl.u32 %v1112, 16
        %v1163 = vshll.u32 %v1112, 16
        %v1165 = vrot.slane %v1163, 1
        %v1166 = vor.u32 %v1161, %v1165
        %v1168 = vshll.u32 %v1124, 16
        %v1170 = vrot.slane %v1168, 1
        %v1171 = vsel %vm1135, %v1166, %v1170
        %v1173 = vshrl.u32 %v1113, 16
        %v1175 = vshll.u32 %v1113, 16
        %v1177 = vrot.slane %v1175, 1
        %v1178 = vor.u32 %v1173, %v1177
        %v1180 = vshll.u32 %v1125, 16
        %v1182 = vrot.slane %v1180, 1
        %v1183 = vsel %vm1135, %v1178, %v1182
        %v1185 = vshrl.u32 %v1114, 16
        %v1187 = vshll.u32 %v1114, 16
        %v1189 = vrot.slane %v1187, 1
        %v1190 = vor.u32 %v1185, %v1189
        %v1192 = vshll.u32 %v1126, 16
        %v1194 = vrot.slane %v1192, 1
        %v1195 = vsel %vm1135, %v1190, %v1194
        %v1197 = vshrl.u32 %v1115, 16
        %v1199 = vshll.u32 %v1115, 16
        %v1201 = vrot.slane %v1199, 1
        %v1202 = vor.u32 %v1197, %v1201
        %v1204 = vshll.u32 %v1127, 16
        %v1206 = vrot.slane %v1204, 1
        %v1207 = vsel %vm1135, %v1202, %v1206
        %v1209 = vshrl.u32 %v1116, 16
        %v1211 = vshll.u32 %v1116, 16
        %v1213 = vrot.slane %v1211, 1
        %v1214 = vor.u32 %v1209, %v1213
        %v1216 = vshll.u32 %v1128, 16
        %v1218 = vrot.slane %v1216, 1
        %v1219 = vsel %vm1135, %v1214, %v1218
        %v1221 = vshrl.u32 %v1117, 16
        %v1223 = vshll.u32 %v1117, 16
        %v1225 = vrot.slane %v1223, 1
        %v1226 = vor.u32 %v1221, %v1225
        %v1228 = vshll.u32 %v1129, 16
        %v1230 = vrot.slane %v1228, 1
        %v1231 = vsel %vm1135, %v1226, %v1230
        %v1236 = vunpack.c.l.b16 %v1131
        %v1237 = vunpack.c.l.b16 %v1132
        %v1238 = vunpack.c.l.b16 %v1133
        %v1239 = vunpack.c.l.b16 %v1134
        %v1240 = vpack.c.b16 %v1237, %v1236
        %v1241 = vpack.c.b16 %v1239, %v1238
        %vm1244 = vcmask 261120
        %v1246 = vsel %vm1244, %v1147, 0
        %v1249 = vsel %vm1244, %v1159, 0
        %v1252 = vsel %vm1244, %v1171, 0
        %v1255 = vsel %vm1244, %v1183, 0
        %v1258 = vsel %vm1244, %v1195, 0
        %v1261 = vsel %vm1244, %v1207, 0
        %v1264 = vsel %vm1244, %v1219, 0
        %v1267 = vsel %vm1244, %v1231, 0
        %1269 = vmatprep.subr.bf16.mxu0 0
        %1270 = vmatpush1.bf16.msra.mxu0 %v1240
        %1271 = vmatprep.subr.bf16.mxu0 0
        %1272 = vmatpush1.bf16.msra.mxu0 %v1241
        %1273 = vmatprep.subr.bf16.mxu0 0
        %1274 = vmatpush1.bf16.msra.mxu0 0
        %1275 = vmatprep.subr.bf16.mxu0 0
        %1276 = vmatpush1.bf16.msra.mxu0 0
        %1277 = vmatprep.subr.bf16.mxu0 0
        %1278 = vmatpush1.bf16.msra.mxu0 0
        %1279 = vmatprep.subr.bf16.mxu0 0
        %1280 = vmatpush1.bf16.msra.mxu0 0
        %1281 = vmatprep.subr.bf16.mxu0 0
        %1282 = vmatpush1.bf16.msra.mxu0 0
        %1283 = vmatprep.subr.bf16.mxu0 0
        %1284 = vmatpush1.bf16.msra.mxu0 0
        %1285 = vmatprep.subr.bf16.mxu0 0
        %1286 = vmatpush1.bf16.msra.mxu0 0
        %1287 = vmatprep.subr.bf16.mxu0 0
        %1288 = vmatpush1.bf16.msra.mxu0 0
        %1289 = vmatprep.subr.bf16.mxu0 0
        %1290 = vmatpush1.bf16.msra.mxu0 0
        %1291 = vmatprep.subr.bf16.mxu0 0
        %1292 = vmatpush1.bf16.msra.mxu0 0
        %1293 = vmatprep.subr.bf16.mxu0 0
        %1294 = vmatpush1.bf16.msra.mxu0 0
        %1295 = vmatprep.subr.bf16.mxu0 0
        %1296 = vmatpush1.bf16.msra.mxu0 0
        %1297 = vmatprep.subr.bf16.mxu0 0
        %1298 = vmatpush1.bf16.msra.mxu0 0
        %1299 = vmatprep.subr.bf16.mxu0 0
        %1300 = vmatpush1.bf16.msra.mxu0 0
        %1301 = vmatprep.mubr.bf16.mxu0 0
        %1302 = vmatmul.mubr.bf16.gmra.mrb[0].mxu0 %v1246
        %v1303 = vpop.f32.mrb[0].mxu0
        %v1304 = vadd.f32 0.0, %v1303
        %v1305 = vpop.f32.mrb[0].mxu0
        %v1306 = vpop.f32.mrb[0].mxu0
        %v1307 = vadd.f32 0.0, %v1306
        %v1308 = vpop.f32.mrb[0].mxu0
        %1309 = vmatprep.mubr.bf16.mxu0 0
        %1310 = vmatmul.mubr.bf16.gmra.mrb[0].mxu0 %v1249
        %v1311 = vpop.f32.mrb[0].mxu0
        %v1312 = vadd.f32 0.0, %v1311
        %v1313 = vpop.f32.mrb[0].mxu0
        %v1314 = vpop.f32.mrb[0].mxu0
        %v1315 = vadd.f32 0.0, %v1314
        %v1316 = vpop.f32.mrb[0].mxu0
        %1317 = vmatprep.mubr.bf16.mxu0 0
        %1318 = vmatmul.mubr.bf16.gmra.mrb[0].mxu0 %v1252
        %v1319 = vpop.f32.mrb[0].mxu0
        %v1320 = vadd.f32 0.0, %v1319
        %v1321 = vpop.f32.mrb[0].mxu0
        %v1322 = vpop.f32.mrb[0].mxu0
        %v1323 = vadd.f32 0.0, %v1322
        %v1324 = vpop.f32.mrb[0].mxu0
        %1325 = vmatprep.mubr.bf16.mxu0 0
        %1326 = vmatmul.mubr.bf16.gmra.mrb[0].mxu0 %v1255
        %v1327 = vpop.f32.mrb[0].mxu0
        %v1328 = vadd.f32 0.0, %v1327
        %v1329 = vpop.f32.mrb[0].mxu0
        %v1330 = vpop.f32.mrb[0].mxu0
        %v1331 = vadd.f32 0.0, %v1330
        %v1332 = vpop.f32.mrb[0].mxu0
        %1333 = vmatprep.mubr.bf16.mxu0 0
        %1334 = vmatmul.mubr.bf16.gmra.mrb[0].mxu0 %v1258
        %v1335 = vpop.f32.mrb[0].mxu0
        %v1336 = vadd.f32 0.0, %v1335
        %v1337 = vpop.f32.mrb[0].mxu0
        %v1338 = vpop.f32.mrb[0].mxu0
        %v1339 = vadd.f32 0.0, %v1338
        %v1340 = vpop.f32.mrb[0].mxu0
        %1341 = vmatprep.mubr.bf16.mxu0 0
        %1342 = vmatmul.mubr.bf16.gmra.mrb[0].mxu0 %v1261
        %v1343 = vpop.f32.mrb[0].mxu0
        %v1344 = vadd.f32 0.0, %v1343
        %v1345 = vpop.f32.mrb[0].mxu0
        %v1346 = vpop.f32.mrb[0].mxu0
        %v1347 = vadd.f32 0.0, %v1346
        %v1348 = vpop.f32.mrb[0].mxu0
        %1349 = vmatprep.mubr.bf16.mxu0 0
        %1350 = vmatmul.mubr.bf16.gmra.mrb[0].mxu0 %v1264
        %v1351 = vpop.f32.mrb[0].mxu0
        %v1352 = vadd.f32 0.0, %v1351
        %v1353 = vpop.f32.mrb[0].mxu0
        %v1354 = vpop.f32.mrb[0].mxu0
        %v1355 = vadd.f32 0.0, %v1354
        %v1356 = vpop.f32.mrb[0].mxu0
        %1357 = vmatprep.mubr.bf16.mxu0 0
        %1358 = vmatmul.mubr.bf16.gmra.mrb[0].mxu0 %v1267
        %v1359 = vpop.f32.mrb[0].mxu0
        %v1360 = vadd.f32 0.0, %v1359
        %v1361 = vpop.f32.mrb[0].mxu0
        %v1362 = vpop.f32.mrb[0].mxu0
        %v1363 = vadd.f32 0.0, %v1362
        %v1364 = vpop.f32.mrb[0].mxu0
        %1365 = vdwg.mxu0
        %v1370 = vunpack.c.l.b16 %v1118
        %v1371 = vunpack.c.l.b16 %v1119
        %v1372 = vunpack.c.l.b16 %v1120
        %v1373 = vunpack.c.l.b16 %v1121
        %v1374 = vpack.c.b16 %v1371, %v1370
        %v1375 = vpack.c.b16 %v1373, %v1372
        %v1378 = vsel %vm1244, %v1110, 0
        %v1380 = vsel %vm1244, %v1111, 0
        %v1382 = vsel %vm1244, %v1112, 0
        %v1384 = vsel %vm1244, %v1113, 0
        %v1386 = vsel %vm1244, %v1114, 0
        %v1388 = vsel %vm1244, %v1115, 0
        %v1390 = vsel %vm1244, %v1116, 0
        %v1392 = vsel %vm1244, %v1117, 0
        %1394 = vmatprep.subr.bf16.mxu0 0
        %1395 = vmatpush1.bf16.msra.mxu0 %v1374
        %1396 = vmatprep.subr.bf16.mxu0 0
        %1397 = vmatpush1.bf16.msra.mxu0 %v1375
        %1398 = vmatprep.subr.bf16.mxu0 0
        %1399 = vmatpush1.bf16.msra.mxu0 0
        %1400 = vmatprep.subr.bf16.mxu0 0
        %1401 = vmatpush1.bf16.msra.mxu0 0
        %1402 = vmatprep.subr.bf16.mxu0 0
        %1403 = vmatpush1.bf16.msra.mxu0 0
        %1404 = vmatprep.subr.bf16.mxu0 0
        %1405 = vmatpush1.bf16.msra.mxu0 0
        %1406 = vmatprep.subr.bf16.mxu0 0
        %1407 = vmatpush1.bf16.msra.mxu0 0
        %1408 = vmatprep.subr.bf16.mxu0 0
        %1409 = vmatpush1.bf16.msra.mxu0 0
        %1410 = vmatprep.subr.bf16.mxu0 0
        %1411 = vmatpush1.bf16.msra.mxu0 0
        %1412 = vmatprep.subr.bf16.mxu0 0
        %1413 = vmatpush1.bf16.msra.mxu0 0
        %1414 = vmatprep.subr.bf16.mxu0 0
        %1415 = vmatpush1.bf16.msra.mxu0 0
        %1416 = vmatprep.subr.bf16.mxu0 0
        %1417 = vmatpush1.bf16.msra.mxu0 0
        %1418 = vmatprep.subr.bf16.mxu0 0
        %1419 = vmatpush1.bf16.msra.mxu0 0
        %1420 = vmatprep.subr.bf16.mxu0 0
        %1421 = vmatpush1.bf16.msra.mxu0 0
        %1422 = vmatprep.subr.bf16.mxu0 0
        %1423 = vmatpush1.bf16.msra.mxu0 0
        %1424 = vmatprep.subr.bf16.mxu0 0
        %1425 = vmatpush1.bf16.msra.mxu0 0
        %1426 = vmatprep.mubr.bf16.mxu0 0
        %1427 = vmatmul.mubr.bf16.gmra.mrb[0].mxu0 %v1378
        %v1428 = vpop.f32.mrb[0].mxu0
        %v1429 = vadd.f32 %v1304, %v1428
        %v1430 = vpop.f32.mrb[0].mxu0
        %v1431 = vpop.f32.mrb[0].mxu0
        %v1432 = vadd.f32 %v1307, %v1431
        %v1433 = vpop.f32.mrb[0].mxu0
        %1434 = vmatprep.mubr.bf16.mxu0 0
        %1435 = vmatmul.mubr.bf16.gmra.mrb[0].mxu0 %v1380
        %v1436 = vpop.f32.mrb[0].mxu0
        %v1437 = vadd.f32 %v1312, %v1436
        %v1438 = vpop.f32.mrb[0].mxu0
        %v1439 = vpop.f32.mrb[0].mxu0
        %v1440 = vadd.f32 %v1315, %v1439
        %v1441 = vpop.f32.mrb[0].mxu0
        %1442 = vmatprep.mubr.bf16.mxu0 0
        %1443 = vmatmul.mubr.bf16.gmra.mrb[0].mxu0 %v1382
        %v1444 = vpop.f32.mrb[0].mxu0
        %v1445 = vadd.f32 %v1320, %v1444
        %v1446 = vpop.f32.mrb[0].mxu0
        %v1447 = vpop.f32.mrb[0].mxu0
        %v1448 = vadd.f32 %v1323, %v1447
        %v1449 = vpop.f32.mrb[0].mxu0
        %1450 = vmatprep.mubr.bf16.mxu0 0
        %1451 = vmatmul.mubr.bf16.gmra.mrb[0].mxu0 %v1384
        %v1452 = vpop.f32.mrb[0].mxu0
        %v1453 = vadd.f32 %v1328, %v1452
        %v1454 = vpop.f32.mrb[0].mxu0
        %v1455 = vpop.f32.mrb[0].mxu0
        %v1456 = vadd.f32 %v1331, %v1455
        %v1457 = vpop.f32.mrb[0].mxu0
        %1458 = vmatprep.mubr.bf16.mxu0 0
        %1459 = vmatmul.mubr.bf16.gmra.mrb[0].mxu0 %v1386
        %v1460 = vpop.f32.mrb[0].mxu0
        %v1461 = vadd.f32 %v1336, %v1460
        %v1462 = vpop.f32.mrb[0].mxu0
        %v1463 = vpop.f32.mrb[0].mxu0
        %v1464 = vadd.f32 %v1339, %v1463
        %v1465 = vpop.f32.mrb[0].mxu0
        %1466 = vmatprep.mubr.bf16.mxu0 0
        %1467 = vmatmul.mubr.bf16.gmra.mrb[0].mxu0 %v1388
        %v1468 = vpop.f32.mrb[0].mxu0
        %v1469 = vadd.f32 %v1344, %v1468
        %v1470 = vpop.f32.mrb[0].mxu0
        %v1471 = vpop.f32.mrb[0].mxu0
        %v1472 = vadd.f32 %v1347, %v1471
        %v1473 = vpop.f32.mrb[0].mxu0
        %1474 = vmatprep.mubr.bf16.mxu0 0
        %1475 = vmatmul.mubr.bf16.gmra.mrb[0].mxu0 %v1390
        %v1476 = vpop.f32.mrb[0].mxu0
        %v1477 = vadd.f32 %v1352, %v1476
        %v1478 = vpop.f32.mrb[0].mxu0
        %v1479 = vpop.f32.mrb[0].mxu0
        %v1480 = vadd.f32 %v1355, %v1479
        %v1481 = vpop.f32.mrb[0].mxu0
        %1482 = vmatprep.mubr.bf16.mxu0 0
        %1483 = vmatmul.mubr.bf16.gmra.mrb[0].mxu0 %v1392
        %v1484 = vpop.f32.mrb[0].mxu0
        %v1485 = vadd.f32 %v1360, %v1484
        %v1486 = vpop.f32.mrb[0].mxu0
        %v1487 = vpop.f32.mrb[0].mxu0
        %v1488 = vadd.f32 %v1363, %v1487
        %v1489 = vpop.f32.mrb[0].mxu0
        %1490 = vdwg.mxu0
        %s1491 = scalar_lea.vmem %s2, 32
        %v1492 = vld [vmem:[%s1491] sm:$0xf]
        %v1493 = vld [vmem:[%s1491 + $0x4] sm:$0xf]
        %v1494 = vld [vmem:[%s1491 + $0x8] sm:$0xf]
        %v1495 = vld [vmem:[%s1491 + $0xc] sm:$0xf]
        %vm1512 = vcmask 1046528
        %v1513 = vrot.slane %v1110, 1
        %v1514 = vrot.slane %v1122, 1
        %v1515 = vsel %vm1512, %v1513, %v1514
        %v1516 = vrot.slane %v1111, 1
        %v1517 = vrot.slane %v1123, 1
        %v1518 = vsel %vm1512, %v1516, %v1517
        %v1519 = vrot.slane %v1112, 1
        %v1520 = vrot.slane %v1124, 1
        %v1521 = vsel %vm1512, %v1519, %v1520
        %v1522 = vrot.slane %v1113, 1
        %v1523 = vrot.slane %v1125, 1
        %v1524 = vsel %vm1512, %v1522, %v1523
        %v1525 = vrot.slane %v1114, 1
        %v1526 = vrot.slane %v1126, 1
        %v1527 = vsel %vm1512, %v1525, %v1526
        %v1528 = vrot.slane %v1115, 1
        %v1529 = vrot.slane %v1127, 1
        %v1530 = vsel %vm1512, %v1528, %v1529
        %v1531 = vrot.slane %v1116, 1
        %v1532 = vrot.slane %v1128, 1
        %v1533 = vsel %vm1512, %v1531, %v1532
        %v1534 = vrot.slane %v1117, 1
        %v1535 = vrot.slane %v1129, 1
        %v1536 = vsel %vm1512, %v1534, %v1535
        %v1541 = vunpack.c.l.b16 %v1492
        %v1542 = vunpack.c.l.b16 %v1493
        %v1543 = vunpack.c.l.b16 %v1494
        %v1544 = vunpack.c.l.b16 %v1495
        %v1545 = vpack.c.b16 %v1542, %v1541
        %v1546 = vpack.c.b16 %v1544, %v1543
        %v1550 = vsel %vm1244, %v1515, 0
        %v1553 = vsel %vm1244, %v1518, 0
        %v1556 = vsel %vm1244, %v1521, 0
        %v1559 = vsel %vm1244, %v1524, 0
        %v1562 = vsel %vm1244, %v1527, 0
        %v1565 = vsel %vm1244, %v1530, 0
        %v1568 = vsel %vm1244, %v1533, 0
        %v1571 = vsel %vm1244, %v1536, 0
        %1573 = vmatprep.subr.bf16.mxu0 0
        %1574 = vmatpush1.bf16.msra.mxu0 %v1545
        %1575 = vmatprep.subr.bf16.mxu0 0
        %1576 = vmatpush1.bf16.msra.mxu0 %v1546
        %1577 = vmatprep.subr.bf16.mxu0 0
        %1578 = vmatpush1.bf16.msra.mxu0 0
        %1579 = vmatprep.subr.bf16.mxu0 0
        %1580 = vmatpush1.bf16.msra.mxu0 0
        %1581 = vmatprep.subr.bf16.mxu0 0
        %1582 = vmatpush1.bf16.msra.mxu0 0
        %1583 = vmatprep.subr.bf16.mxu0 0
        %1584 = vmatpush1.bf16.msra.mxu0 0
        %1585 = vmatprep.subr.bf16.mxu0 0
        %1586 = vmatpush1.bf16.msra.mxu0 0
        %1587 = vmatprep.subr.bf16.mxu0 0
        %1588 = vmatpush1.bf16.msra.mxu0 0
        %1589 = vmatprep.subr.bf16.mxu0 0
        %1590 = vmatpush1.bf16.msra.mxu0 0
        %1591 = vmatprep.subr.bf16.mxu0 0
        %1592 = vmatpush1.bf16.msra.mxu0 0
        %1593 = vmatprep.subr.bf16.mxu0 0
        %1594 = vmatpush1.bf16.msra.mxu0 0
        %1595 = vmatprep.subr.bf16.mxu0 0
        %1596 = vmatpush1.bf16.msra.mxu0 0
        %1597 = vmatprep.subr.bf16.mxu0 0
        %1598 = vmatpush1.bf16.msra.mxu0 0
        %1599 = vmatprep.subr.bf16.mxu0 0
        %1600 = vmatpush1.bf16.msra.mxu0 0
        %1601 = vmatprep.subr.bf16.mxu0 0
        %1602 = vmatpush1.bf16.msra.mxu0 0
        %1603 = vmatprep.subr.bf16.mxu0 0
        %1604 = vmatpush1.bf16.msra.mxu0 0
        %1605 = vmatprep.mubr.bf16.mxu0 0
        %1606 = vmatmul.mubr.bf16.gmra.mrb[0].mxu0 %v1550
        %v1607 = vpop.f32.mrb[0].mxu0
        %v1608 = vadd.f32 0.0, %v1607
        %v1609 = vpop.f32.mrb[0].mxu0
        %v1610 = vpop.f32.mrb[0].mxu0
        %v1611 = vadd.f32 0.0, %v1610
        %v1612 = vpop.f32.mrb[0].mxu0
        %1613 = vmatprep.mubr.bf16.mxu0 0
        %1614 = vmatmul.mubr.bf16.gmra.mrb[0].mxu0 %v1553
        %v1615 = vpop.f32.mrb[0].mxu0
        %v1616 = vadd.f32 0.0, %v1615
        %v1617 = vpop.f32.mrb[0].mxu0
        %v1618 = vpop.f32.mrb[0].mxu0
        %v1619 = vadd.f32 0.0, %v1618
        %v1620 = vpop.f32.mrb[0].mxu0
        %1621 = vmatprep.mubr.bf16.mxu0 0
        %1622 = vmatmul.mubr.bf16.gmra.mrb[0].mxu0 %v1556
        %v1623 = vpop.f32.mrb[0].mxu0
        %v1624 = vadd.f32 0.0, %v1623
        %v1625 = vpop.f32.mrb[0].mxu0
        %v1626 = vpop.f32.mrb[0].mxu0
        %v1627 = vadd.f32 0.0, %v1626
        %v1628 = vpop.f32.mrb[0].mxu0
        %1629 = vmatprep.mubr.bf16.mxu0 0
        %1630 = vmatmul.mubr.bf16.gmra.mrb[0].mxu0 %v1559
        %v1631 = vpop.f32.mrb[0].mxu0
        %v1632 = vadd.f32 0.0, %v1631
        %v1633 = vpop.f32.mrb[0].mxu0
        %v1634 = vpop.f32.mrb[0].mxu0
        %v1635 = vadd.f32 0.0, %v1634
        %v1636 = vpop.f32.mrb[0].mxu0
        %1637 = vmatprep.mubr.bf16.mxu0 0
        %1638 = vmatmul.mubr.bf16.gmra.mrb[0].mxu0 %v1562
        %v1639 = vpop.f32.mrb[0].mxu0
        %v1640 = vadd.f32 0.0, %v1639
        %v1641 = vpop.f32.mrb[0].mxu0
        %v1642 = vpop.f32.mrb[0].mxu0
        %v1643 = vadd.f32 0.0, %v1642
        %v1644 = vpop.f32.mrb[0].mxu0
        %1645 = vmatprep.mubr.bf16.mxu0 0
        %1646 = vmatmul.mubr.bf16.gmra.mrb[0].mxu0 %v1565
        %v1647 = vpop.f32.mrb[0].mxu0
        %v1648 = vadd.f32 0.0, %v1647
        %v1649 = vpop.f32.mrb[0].mxu0
        %v1650 = vpop.f32.mrb[0].mxu0
        %v1651 = vadd.f32 0.0, %v1650
        %v1652 = vpop.f32.mrb[0].mxu0
        %1653 = vmatprep.mubr.bf16.mxu0 0
        %1654 = vmatmul.mubr.bf16.gmra.mrb[0].mxu0 %v1568
        %v1655 = vpop.f32.mrb[0].mxu0
        %v1656 = vadd.f32 0.0, %v1655
        %v1657 = vpop.f32.mrb[0].mxu0
        %v1658 = vpop.f32.mrb[0].mxu0
        %v1659 = vadd.f32 0.0, %v1658
        %v1660 = vpop.f32.mrb[0].mxu0
        %1661 = vmatprep.mubr.bf16.mxu0 0
        %1662 = vmatmul.mubr.bf16.gmra.mrb[0].mxu0 %v1571
        %v1663 = vpop.f32.mrb[0].mxu0
        %v1664 = vadd.f32 0.0, %v1663
        %v1665 = vpop.f32.mrb[0].mxu0
        %v1666 = vpop.f32.mrb[0].mxu0
        %v1667 = vadd.f32 0.0, %v1666
        %v1668 = vpop.f32.mrb[0].mxu0
        %1669 = vdwg.mxu0
        %v1670 = vadd.f32 %v1429, %v1608
        %v1671 = vadd.f32 %v1432, %v1611
        %v1672 = vadd.f32 %v1437, %v1616
        %v1673 = vadd.f32 %v1440, %v1619
        %v1674 = vadd.f32 %v1445, %v1624
        %v1675 = vadd.f32 %v1448, %v1627
        %v1676 = vadd.f32 %v1453, %v1632
        %v1677 = vadd.f32 %v1456, %v1635
        %v1678 = vadd.f32 %v1461, %v1640
        %v1679 = vadd.f32 %v1464, %v1643
        %v1680 = vadd.f32 %v1469, %v1648
        %v1681 = vadd.f32 %v1472, %v1651
        %v1682 = vadd.f32 %v1477, %v1656
        %v1683 = vadd.f32 %v1480, %v1659
        %v1684 = vadd.f32 %v1485, %v1664
        %v1685 = vadd.f32 %v1488, %v1667
        %s1686 = scalar_lea.vmem %s2, 48
        %v1687 = vld [vmem:[%s1686] sm:$0xf]
        %v1688 = vld [vmem:[%s1686 + $0x4] sm:$0xf]
        %v1689 = vld [vmem:[%s1686 + $0x8] sm:$0xf]
        %v1690 = vld [vmem:[%s1686 + $0xc] sm:$0xf]
        %vm1691 = vsmask.f32 6400
        %v1692 = vrot.slane %v1137, 1
        %v1693 = vrot.slane %v1139, 2
        %v1694 = vor.u32 %v1692, %v1693
        %v1695 = vshrl.u32 %v1122, 16
        %v1697 = vrot.slane %v1695, 1
        %v1698 = vrot.slane %v1144, 2
        %v1699 = vor.u32 %v1697, %v1698
        %v1700 = vsel %vm1691, %v1694, %v1699
        %v1701 = vrot.slane %v1149, 1
        %v1702 = vrot.slane %v1151, 2
        %v1703 = vor.u32 %v1701, %v1702
        %v1704 = vshrl.u32 %v1123, 16
        %v1706 = vrot.slane %v1704, 1
        %v1707 = vrot.slane %v1156, 2
        %v1708 = vor.u32 %v1706, %v1707
        %v1709 = vsel %vm1691, %v1703, %v1708
        %v1710 = vrot.slane %v1161, 1
        %v1711 = vrot.slane %v1163, 2
        %v1712 = vor.u32 %v1710, %v1711
        %v1713 = vshrl.u32 %v1124, 16
        %v1715 = vrot.slane %v1713, 1
        %v1716 = vrot.slane %v1168, 2
        %v1717 = vor.u32 %v1715, %v1716
        %v1718 = vsel %vm1691, %v1712, %v1717
        %v1719 = vrot.slane %v1173, 1
        %v1720 = vrot.slane %v1175, 2
        %v1721 = vor.u32 %v1719, %v1720
        %v1722 = vshrl.u32 %v1125, 16
        %v1724 = vrot.slane %v1722, 1
        %v1725 = vrot.slane %v1180, 2
        %v1726 = vor.u32 %v1724, %v1725
        %v1727 = vsel %vm1691, %v1721, %v1726
        %v1728 = vrot.slane %v1185, 1
        %v1729 = vrot.slane %v1187, 2
        %v1730 = vor.u32 %v1728, %v1729
        %v1731 = vshrl.u32 %v1126, 16
        %v1733 = vrot.slane %v1731, 1
        %v1734 = vrot.slane %v1192, 2
        %v1735 = vor.u32 %v1733, %v1734
        %v1736 = vsel %vm1691, %v1730, %v1735
        %v1737 = vrot.slane %v1197, 1
        %v1738 = vrot.slane %v1199, 2
        %v1739 = vor.u32 %v1737, %v1738
        %v1740 = vshrl.u32 %v1127, 16
        %v1742 = vrot.slane %v1740, 1
        %v1743 = vrot.slane %v1204, 2
        %v1744 = vor.u32 %v1742, %v1743
        %v1745 = vsel %vm1691, %v1739, %v1744
        %v1746 = vrot.slane %v1209, 1
        %v1747 = vrot.slane %v1211, 2
        %v1748 = vor.u32 %v1746, %v1747
        %v1749 = vshrl.u32 %v1128, 16
        %v1751 = vrot.slane %v1749, 1
        %v1752 = vrot.slane %v1216, 2
        %v1753 = vor.u32 %v1751, %v1752
        %v1754 = vsel %vm1691, %v1748, %v1753
        %v1755 = vrot.slane %v1221, 1
        %v1756 = vrot.slane %v1223, 2
        %v1757 = vor.u32 %v1755, %v1756
        %v1758 = vshrl.u32 %v1129, 16
        %v1760 = vrot.slane %v1758, 1
        %v1761 = vrot.slane %v1228, 2
        %v1762 = vor.u32 %v1760, %v1761
        %v1763 = vsel %vm1691, %v1757, %v1762
        %v1768 = vunpack.c.l.b16 %v1687
        %v1769 = vunpack.c.l.b16 %v1688
        %v1770 = vunpack.c.l.b16 %v1689
        %v1771 = vunpack.c.l.b16 %v1690
        %v1772 = vpack.c.b16 %v1769, %v1768
        %v1773 = vpack.c.b16 %v1771, %v1770
        %v1777 = vsel %vm1244, %v1700, 0
        %v1780 = vsel %vm1244, %v1709, 0
        %v1783 = vsel %vm1244, %v1718, 0
        %v1786 = vsel %vm1244, %v1727, 0
        %v1789 = vsel %vm1244, %v1736, 0
        %v1792 = vsel %vm1244, %v1745, 0
        %v1795 = vsel %vm1244, %v1754, 0
        %v1798 = vsel %vm1244, %v1763, 0
        %1800 = vmatprep.subr.bf16.mxu0 0
        %1801 = vmatpush1.bf16.msra.mxu0 %v1772
        %1802 = vmatprep.subr.bf16.mxu0 0
        %1803 = vmatpush1.bf16.msra.mxu0 %v1773
        %1804 = vmatprep.subr.bf16.mxu0 0
        %1805 = vmatpush1.bf16.msra.mxu0 0
        %1806 = vmatprep.subr.bf16.mxu0 0
        %1807 = vmatpush1.bf16.msra.mxu0 0
        %1808 = vmatprep.subr.bf16.mxu0 0
        %1809 = vmatpush1.bf16.msra.mxu0 0
        %1810 = vmatprep.subr.bf16.mxu0 0
        %1811 = vmatpush1.bf16.msra.mxu0 0
        %1812 = vmatprep.subr.bf16.mxu0 0
        %1813 = vmatpush1.bf16.msra.mxu0 0
        %1814 = vmatprep.subr.bf16.mxu0 0
        %1815 = vmatpush1.bf16.msra.mxu0 0
        %1816 = vmatprep.subr.bf16.mxu0 0
        %1817 = vmatpush1.bf16.msra.mxu0 0
        %1818 = vmatprep.subr.bf16.mxu0 0
        %1819 = vmatpush1.bf16.msra.mxu0 0
        %1820 = vmatprep.subr.bf16.mxu0 0
        %1821 = vmatpush1.bf16.msra.mxu0 0
        %1822 = vmatprep.subr.bf16.mxu0 0
        %1823 = vmatpush1.bf16.msra.mxu0 0
        %1824 = vmatprep.subr.bf16.mxu0 0
        %1825 = vmatpush1.bf16.msra.mxu0 0
        %1826 = vmatprep.subr.bf16.mxu0 0
        %1827 = vmatpush1.bf16.msra.mxu0 0
        %1828 = vmatprep.subr.bf16.mxu0 0
        %1829 = vmatpush1.bf16.msra.mxu0 0
        %1830 = vmatprep.subr.bf16.mxu0 0
        %1831 = vmatpush1.bf16.msra.mxu0 0
        %1832 = vmatprep.mubr.bf16.mxu0 0
        %1833 = vmatmul.mubr.bf16.gmra.mrb[0].mxu0 %v1777
        %v1834 = vpop.f32.mrb[0].mxu0
        %v1835 = vadd.f32 0.0, %v1834
        %v1836 = vpop.f32.mrb[0].mxu0
        %v1837 = vpop.f32.mrb[0].mxu0
        %v1838 = vadd.f32 0.0, %v1837
        %v1839 = vpop.f32.mrb[0].mxu0
        %1840 = vmatprep.mubr.bf16.mxu0 0
        %1841 = vmatmul.mubr.bf16.gmra.mrb[0].mxu0 %v1780
        %v1842 = vpop.f32.mrb[0].mxu0
        %v1843 = vadd.f32 0.0, %v1842
        %v1844 = vpop.f32.mrb[0].mxu0
        %v1845 = vpop.f32.mrb[0].mxu0
        %v1846 = vadd.f32 0.0, %v1845
        %v1847 = vpop.f32.mrb[0].mxu0
        %1848 = vmatprep.mubr.bf16.mxu0 0
        %1849 = vmatmul.mubr.bf16.gmra.mrb[0].mxu0 %v1783
        %v1850 = vpop.f32.mrb[0].mxu0
        %v1851 = vadd.f32 0.0, %v1850
        %v1852 = vpop.f32.mrb[0].mxu0
        %v1853 = vpop.f32.mrb[0].mxu0
        %v1854 = vadd.f32 0.0, %v1853
        %v1855 = vpop.f32.mrb[0].mxu0
        %1856 = vmatprep.mubr.bf16.mxu0 0
        %1857 = vmatmul.mubr.bf16.gmra.mrb[0].mxu0 %v1786
        %v1858 = vpop.f32.mrb[0].mxu0
        %v1859 = vadd.f32 0.0, %v1858
        %v1860 = vpop.f32.mrb[0].mxu0
        %v1861 = vpop.f32.mrb[0].mxu0
        %v1862 = vadd.f32 0.0, %v1861
        %v1863 = vpop.f32.mrb[0].mxu0
        %1864 = vmatprep.mubr.bf16.mxu0 0
        %1865 = vmatmul.mubr.bf16.gmra.mrb[0].mxu0 %v1789
        %v1866 = vpop.f32.mrb[0].mxu0
        %v1867 = vadd.f32 0.0, %v1866
        %v1868 = vpop.f32.mrb[0].mxu0
        %v1869 = vpop.f32.mrb[0].mxu0
        %v1870 = vadd.f32 0.0, %v1869
        %v1871 = vpop.f32.mrb[0].mxu0
        %1872 = vmatprep.mubr.bf16.mxu0 0
        %1873 = vmatmul.mubr.bf16.gmra.mrb[0].mxu0 %v1792
        %v1874 = vpop.f32.mrb[0].mxu0
        %v1875 = vadd.f32 0.0, %v1874
        %v1876 = vpop.f32.mrb[0].mxu0
        %v1877 = vpop.f32.mrb[0].mxu0
        %v1878 = vadd.f32 0.0, %v1877
        %v1879 = vpop.f32.mrb[0].mxu0
        %1880 = vmatprep.mubr.bf16.mxu0 0
        %1881 = vmatmul.mubr.bf16.gmra.mrb[0].mxu0 %v1795
        %v1882 = vpop.f32.mrb[0].mxu0
        %v1883 = vadd.f32 0.0, %v1882
        %v1884 = vpop.f32.mrb[0].mxu0
        %v1885 = vpop.f32.mrb[0].mxu0
        %v1886 = vadd.f32 0.0, %v1885
        %v1887 = vpop.f32.mrb[0].mxu0
        %1888 = vmatprep.mubr.bf16.mxu0 0
        %1889 = vmatmul.mubr.bf16.gmra.mrb[0].mxu0 %v1798
        %v1890 = vpop.f32.mrb[0].mxu0
        %v1891 = vadd.f32 0.0, %v1890
        %v1892 = vpop.f32.mrb[0].mxu0
        %v1893 = vpop.f32.mrb[0].mxu0
        %v1894 = vadd.f32 0.0, %v1893
        %v1895 = vpop.f32.mrb[0].mxu0
        %1896 = vdwg.mxu0
        %v1897 = vadd.f32 %v1670, %v1835
        %v1898 = vadd.f32 %v1671, %v1838
        %v1899 = vadd.f32 %v1672, %v1843
        %v1900 = vadd.f32 %v1673, %v1846
        %v1901 = vadd.f32 %v1674, %v1851
        %v1902 = vadd.f32 %v1675, %v1854
        %v1903 = vadd.f32 %v1676, %v1859
        %v1904 = vadd.f32 %v1677, %v1862
        %v1905 = vadd.f32 %v1678, %v1867
        %v1906 = vadd.f32 %v1679, %v1870
        %v1907 = vadd.f32 %v1680, %v1875
        %v1908 = vadd.f32 %v1681, %v1878
        %v1909 = vadd.f32 %v1682, %v1883
        %v1910 = vadd.f32 %v1683, %v1886
        %v1911 = vadd.f32 %v1684, %v1891
        %v1912 = vadd.f32 %v1685, %v1894
        %v1913 = vcombine.low %v1054, %v959
        %v1914 = vcombine.low %v1055, %v964
        %v1915 = vcombine.low %v967, %v1057
        %v1916 = vcombine.low %v972, %v1058
        %v1917 = vcombine.low %v1059, %v980
        %v1918 = vcombine.low %v1060, %v983
        %v1919 = vcombine.low %v988, %v1062
        %v1920 = vcombine.low %v991, %v1063
        %v1921 = vcombine.low %v1064, %v999
        %v1922 = vcombine.low %v1065, %v1004
        %v1923 = vcombine.low %v1007, %v1067
        %v1924 = vcombine.low %v1012, %v1068
        %v1925 = vcombine.low %v1069, %v1020
        %v1926 = vcombine.low %v1070, %v1023
        %v1927 = vcombine.low %v1028, %v1072
        %v1928 = vcombine.low %v1031, %v1073
        %v1945 = vpack.c.bf16 %v1914, %v1913
        %v1946 = vpack.c.bf16 %v1916, %v1915
        %v1947 = vpack.c.bf16 %v1918, %v1917
        %v1948 = vpack.c.bf16 %v1920, %v1919
        %v1949 = vpack.c.bf16 %v1922, %v1921
        %v1950 = vpack.c.bf16 %v1924, %v1923
        %v1951 = vpack.c.bf16 %v1926, %v1925
        %v1952 = vpack.c.bf16 %v1928, %v1927
        %s1953 = scalar_lea.vmem %s2, 64
        %v1954 = vld [vmem:[%s1953] sm:$0xf]
        %v1955 = vld [vmem:[%s1953 + $0x4] sm:$0xf]
        %v1956 = vld [vmem:[%s1953 + $0x8] sm:$0xf]
        %v1957 = vld [vmem:[%s1953 + $0xc] sm:$0xf]
        %v1962 = vunpack.c.l.b16 %v1954
        %v1963 = vunpack.c.l.b16 %v1955
        %v1964 = vunpack.c.l.b16 %v1956
        %v1965 = vunpack.c.l.b16 %v1957
        %v1966 = vpack.c.b16 %v1963, %v1962
        %v1967 = vpack.c.b16 %v1965, %v1964
        %v1971 = vsel %vm1244, %v1945, 0
        %v1974 = vsel %vm1244, %v1946, 0
        %v1977 = vsel %vm1244, %v1947, 0
        %v1980 = vsel %vm1244, %v1948, 0
        %v1983 = vsel %vm1244, %v1949, 0
        %v1986 = vsel %vm1244, %v1950, 0
        %v1989 = vsel %vm1244, %v1951, 0
        %v1992 = vsel %vm1244, %v1952, 0
        %1994 = vmatprep.subr.bf16.mxu0 0
        %1995 = vmatpush1.bf16.msra.mxu0 %v1966
        %1996 = vmatprep.subr.bf16.mxu0 0
        %1997 = vmatpush1.bf16.msra.mxu0 %v1967
        %1998 = vmatprep.subr.bf16.mxu0 0
        %1999 = vmatpush1.bf16.msra.mxu0 0
        %2000 = vmatprep.subr.bf16.mxu0 0
        %2001 = vmatpush1.bf16.msra.mxu0 0
        %2002 = vmatprep.subr.bf16.mxu0 0
        %2003 = vmatpush1.bf16.msra.mxu0 0
        %2004 = vmatprep.subr.bf16.mxu0 0
        %2005 = vmatpush1.bf16.msra.mxu0 0
        %2006 = vmatprep.subr.bf16.mxu0 0
        %2007 = vmatpush1.bf16.msra.mxu0 0
        %2008 = vmatprep.subr.bf16.mxu0 0
        %2009 = vmatpush1.bf16.msra.mxu0 0
        %2010 = vmatprep.subr.bf16.mxu0 0
        %2011 = vmatpush1.bf16.msra.mxu0 0
        %2012 = vmatprep.subr.bf16.mxu0 0
        %2013 = vmatpush1.bf16.msra.mxu0 0
        %2014 = vmatprep.subr.bf16.mxu0 0
        %2015 = vmatpush1.bf16.msra.mxu0 0
        %2016 = vmatprep.subr.bf16.mxu0 0
        %2017 = vmatpush1.bf16.msra.mxu0 0
        %2018 = vmatprep.subr.bf16.mxu0 0
        %2019 = vmatpush1.bf16.msra.mxu0 0
        %2020 = vmatprep.subr.bf16.mxu0 0
        %2021 = vmatpush1.bf16.msra.mxu0 0
        %2022 = vmatprep.subr.bf16.mxu0 0
        %2023 = vmatpush1.bf16.msra.mxu0 0
        %2024 = vmatprep.subr.bf16.mxu0 0
        %2025 = vmatpush1.bf16.msra.mxu0 0
        %2026 = vmatprep.mubr.bf16.mxu0 0
        %2027 = vmatmul.mubr.bf16.gmra.mrb[0].mxu0 %v1971
        %v2028 = vpop.f32.mrb[0].mxu0
        %v2029 = vadd.f32 0.0, %v2028
        %v2030 = vpop.f32.mrb[0].mxu0
        %v2031 = vpop.f32.mrb[0].mxu0
        %v2032 = vadd.f32 0.0, %v2031
        %v2033 = vpop.f32.mrb[0].mxu0
        %2034 = vmatprep.mubr.bf16.mxu0 0
        %2035 = vmatmul.mubr.bf16.gmra.mrb[0].mxu0 %v1974
        %v2036 = vpop.f32.mrb[0].mxu0
        %v2037 = vadd.f32 0.0, %v2036
        %v2038 = vpop.f32.mrb[0].mxu0
        %v2039 = vpop.f32.mrb[0].mxu0
        %v2040 = vadd.f32 0.0, %v2039
        %v2041 = vpop.f32.mrb[0].mxu0
        %2042 = vmatprep.mubr.bf16.mxu0 0
        %2043 = vmatmul.mubr.bf16.gmra.mrb[0].mxu0 %v1977
        %v2044 = vpop.f32.mrb[0].mxu0
        %v2045 = vadd.f32 0.0, %v2044
        %v2046 = vpop.f32.mrb[0].mxu0
        %v2047 = vpop.f32.mrb[0].mxu0
        %v2048 = vadd.f32 0.0, %v2047
        %v2049 = vpop.f32.mrb[0].mxu0
        %2050 = vmatprep.mubr.bf16.mxu0 0
        %2051 = vmatmul.mubr.bf16.gmra.mrb[0].mxu0 %v1980
        %v2052 = vpop.f32.mrb[0].mxu0
        %v2053 = vadd.f32 0.0, %v2052
        %v2054 = vpop.f32.mrb[0].mxu0
        %v2055 = vpop.f32.mrb[0].mxu0
        %v2056 = vadd.f32 0.0, %v2055
        %v2057 = vpop.f32.mrb[0].mxu0
        %2058 = vmatprep.mubr.bf16.mxu0 0
        %2059 = vmatmul.mubr.bf16.gmra.mrb[0].mxu0 %v1983
        %v2060 = vpop.f32.mrb[0].mxu0
        %v2061 = vadd.f32 0.0, %v2060
        %v2062 = vpop.f32.mrb[0].mxu0
        %v2063 = vpop.f32.mrb[0].mxu0
        %v2064 = vadd.f32 0.0, %v2063
        %v2065 = vpop.f32.mrb[0].mxu0
        %2066 = vmatprep.mubr.bf16.mxu0 0
        %2067 = vmatmul.mubr.bf16.gmra.mrb[0].mxu0 %v1986
        %v2068 = vpop.f32.mrb[0].mxu0
        %v2069 = vadd.f32 0.0, %v2068
        %v2070 = vpop.f32.mrb[0].mxu0
        %v2071 = vpop.f32.mrb[0].mxu0
        %v2072 = vadd.f32 0.0, %v2071
        %v2073 = vpop.f32.mrb[0].mxu0
        %2074 = vmatprep.mubr.bf16.mxu0 0
        %2075 = vmatmul.mubr.bf16.gmra.mrb[0].mxu0 %v1989
        %v2076 = vpop.f32.mrb[0].mxu0
        %v2077 = vadd.f32 0.0, %v2076
        %v2078 = vpop.f32.mrb[0].mxu0
        %v2079 = vpop.f32.mrb[0].mxu0
        %v2080 = vadd.f32 0.0, %v2079
        %v2081 = vpop.f32.mrb[0].mxu0
        %2082 = vmatprep.mubr.bf16.mxu0 0
        %2083 = vmatmul.mubr.bf16.gmra.mrb[0].mxu0 %v1992
        %v2084 = vpop.f32.mrb[0].mxu0
        %v2085 = vadd.f32 0.0, %v2084
        %v2086 = vpop.f32.mrb[0].mxu0
        %v2087 = vpop.f32.mrb[0].mxu0
        %v2088 = vadd.f32 0.0, %v2087
        %v2089 = vpop.f32.mrb[0].mxu0
        %2090 = vdwg.mxu0
        %v2091 = vadd.f32 %v1897, %v2029
        %v2092 = vadd.f32 %v1898, %v2032
        %v2093 = vadd.f32 %v1899, %v2037
        %v2094 = vadd.f32 %v1900, %v2040
        %v2095 = vadd.f32 %v1901, %v2045
        %v2096 = vadd.f32 %v1902, %v2048
        %v2097 = vadd.f32 %v1903, %v2053
        %v2098 = vadd.f32 %v1904, %v2056
        %v2099 = vadd.f32 %v1905, %v2061
        %v2100 = vadd.f32 %v1906, %v2064
        %v2101 = vadd.f32 %v1907, %v2069
        %v2102 = vadd.f32 %v1908, %v2072
        %v2103 = vadd.f32 %v1909, %v2077
        %v2104 = vadd.f32 %v1910, %v2080
        %v2105 = vadd.f32 %v1911, %v2085
        %v2106 = vadd.f32 %v1912, %v2088
        %v2107 = vld [vmem:[%s3] sm:$0x1]
        %v2109 = vlaneseq
        %v2110 = vshrl.u32 %v2109, 7
        %v2111 = vsub.s32 0, %v2110
        %v2112 = vrot.slane %v2107, %v2111
        %v2114 = vadd.f32 %v2091, %v2112
        %v2115 = vadd.f32 %v2092, %v2112
        %v2116 = vadd.f32 %v2093, %v2112
        %v2117 = vadd.f32 %v2094, %v2112
        %v2118 = vadd.f32 %v2095, %v2112
        %v2119 = vadd.f32 %v2096, %v2112
        %v2120 = vadd.f32 %v2097, %v2112
        %v2121 = vadd.f32 %v2098, %v2112
        %v2122 = vadd.f32 %v2099, %v2112
        %v2123 = vadd.f32 %v2100, %v2112
        %v2124 = vadd.f32 %v2101, %v2112
        %v2125 = vadd.f32 %v2102, %v2112
        %v2126 = vadd.f32 %v2103, %v2112
        %v2127 = vadd.f32 %v2104, %v2112
        %v2128 = vadd.f32 %v2105, %v2112
        %v2129 = vadd.f32 %v2106, %v2112
        %v2130 = vmax.f32 %v2114, 0.0
        %v2131 = vmax.f32 %v2115, 0.0
        %v2132 = vmax.f32 %v2116, 0.0
        %v2133 = vmax.f32 %v2117, 0.0
        %v2134 = vmax.f32 %v2118, 0.0
        %v2135 = vmax.f32 %v2119, 0.0
        %v2136 = vmax.f32 %v2120, 0.0
        %v2137 = vmax.f32 %v2121, 0.0
        %v2138 = vmax.f32 %v2122, 0.0
        %v2139 = vmax.f32 %v2123, 0.0
        %v2140 = vmax.f32 %v2124, 0.0
        %v2141 = vmax.f32 %v2125, 0.0
        %v2142 = vmax.f32 %v2126, 0.0
        %v2143 = vmax.f32 %v2127, 0.0
        %v2144 = vmax.f32 %v2128, 0.0
        %v2145 = vmax.f32 %v2129, 0.0
        %v2146 = vld [vmem:[%s4] sm:$0xff]
        %v2147 = vld [vmem:[%s4 + $0x8] sm:$0xff]
        %vm2148 = vcmp.gt.f32.partialorder %v2146, 0.5
        %vm2149 = vcmp.gt.f32.partialorder %v2147, 0.5
        %v2150 = vsel %vm2148, 1, 0
        %v2151 = vsel %vm2149, 1, 0
        %vm2152 = vcmp.eq.s32.totalorder %v2150, 1
        %vm2153 = vcmp.eq.s32.totalorder %v2151, 1
        %v2154 = vsel %vm2152, %v2130, -inf
        %v2155 = vsel %vm2153, %v2131, -inf
        %v2156 = vsel %vm2152, %v2132, -inf
        %v2157 = vsel %vm2153, %v2133, -inf
        %v2158 = vsel %vm2152, %v2134, -inf
        %v2159 = vsel %vm2153, %v2135, -inf
        %v2160 = vsel %vm2152, %v2136, -inf
        %v2161 = vsel %vm2153, %v2137, -inf
        %v2162 = vsel %vm2152, %v2138, -inf
        %v2163 = vsel %vm2153, %v2139, -inf
        %v2164 = vsel %vm2152, %v2140, -inf
        %v2165 = vsel %vm2153, %v2141, -inf
        %v2166 = vsel %vm2152, %v2142, -inf
        %v2167 = vsel %vm2153, %v2143, -inf
        %v2168 = vsel %vm2152, %v2144, -inf
        %v2169 = vsel %vm2153, %v2145, -inf
        %v2170 = vmax.f32 %v2154, %v2155
        %v2171 = vrot.slane %v2170, 4
        %v2172 = vmax.f32 %v2170, %v2171
        %v2173 = vrot.slane %v2172, 2
        %v2174 = vmax.f32 %v2172, %v2173
        %v2175 = vrot.slane %v2174, 1
        %v2176 = vmax.f32 %v2174, %v2175
        %v2177 = vmax.f32 %v2156, %v2157
        %v2178 = vrot.slane %v2177, 4
        %v2179 = vmax.f32 %v2177, %v2178
        %v2180 = vrot.slane %v2179, 2
        %v2181 = vmax.f32 %v2179, %v2180
        %v2182 = vrot.slane %v2181, 1
        %v2183 = vmax.f32 %v2181, %v2182
        %v2184 = vmax.f32 %v2158, %v2159
        %v2185 = vrot.slane %v2184, 4
        %v2186 = vmax.f32 %v2184, %v2185
        %v2187 = vrot.slane %v2186, 2
        %v2188 = vmax.f32 %v2186, %v2187
        %v2189 = vrot.slane %v2188, 1
        %v2190 = vmax.f32 %v2188, %v2189
        %v2191 = vmax.f32 %v2160, %v2161
        %v2192 = vrot.slane %v2191, 4
        %v2193 = vmax.f32 %v2191, %v2192
        %v2194 = vrot.slane %v2193, 2
        %v2195 = vmax.f32 %v2193, %v2194
        %v2196 = vrot.slane %v2195, 1
        %v2197 = vmax.f32 %v2195, %v2196
        %v2198 = vmax.f32 %v2162, %v2163
        %v2199 = vrot.slane %v2198, 4
        %v2200 = vmax.f32 %v2198, %v2199
        %v2201 = vrot.slane %v2200, 2
        %v2202 = vmax.f32 %v2200, %v2201
        %v2203 = vrot.slane %v2202, 1
        %v2204 = vmax.f32 %v2202, %v2203
        %v2205 = vmax.f32 %v2164, %v2165
        %v2206 = vrot.slane %v2205, 4
        %v2207 = vmax.f32 %v2205, %v2206
        %v2208 = vrot.slane %v2207, 2
        %v2209 = vmax.f32 %v2207, %v2208
        %v2210 = vrot.slane %v2209, 1
        %v2211 = vmax.f32 %v2209, %v2210
        %v2212 = vmax.f32 %v2166, %v2167
        %v2213 = vrot.slane %v2212, 4
        %v2214 = vmax.f32 %v2212, %v2213
        %v2215 = vrot.slane %v2214, 2
        %v2216 = vmax.f32 %v2214, %v2215
        %v2217 = vrot.slane %v2216, 1
        %v2218 = vmax.f32 %v2216, %v2217
        %v2219 = vmax.f32 %v2168, %v2169
        %v2220 = vrot.slane %v2219, 4
        %v2221 = vmax.f32 %v2219, %v2220
        %v2222 = vrot.slane %v2221, 2
        %v2223 = vmax.f32 %v2221, %v2222
        %v2224 = vrot.slane %v2223, 1
        %v2225 = vmax.f32 %v2223, %v2224
        %v2226 = vpack.c.bf16 %v2176, %v2176
        %v2227 = vpack.c.bf16 %v2183, %v2183
        %v2228 = vpack.c.bf16 %v2190, %v2190
        %v2229 = vpack.c.bf16 %v2197, %v2197
        %v2230 = vpack.c.bf16 %v2204, %v2204
        %v2231 = vpack.c.bf16 %v2211, %v2211
        %v2232 = vpack.c.bf16 %v2218, %v2218
        %v2233 = vpack.c.bf16 %v2225, %v2225
        %v2234 = vld [vmem:[%s5] sm:$0xf]
        %v2235 = vld [vmem:[%s5 + $0x4] sm:$0xf]
        %v2236 = vld [vmem:[%s5 + $0x8] sm:$0xf]
        %v2237 = vld [vmem:[%s5 + $0xc] sm:$0xf]
        %v2238 = vld [vmem:[%s5 + $0x10] sm:$0xf]
        %v2239 = vld [vmem:[%s5 + $0x14] sm:$0xf]
        %v2240 = vld [vmem:[%s5 + $0x18] sm:$0xf]
        %v2241 = vld [vmem:[%s5 + $0x1c] sm:$0xf]
        %v2242 = vld [vmem:[%s5 + $0x20] sm:$0xf]
        %v2243 = vld [vmem:[%s5 + $0x24] sm:$0xf]
        %v2244 = vld [vmem:[%s5 + $0x28] sm:$0xf]
        %v2245 = vld [vmem:[%s5 + $0x2c] sm:$0xf]
        %v2246 = vld [vmem:[%s5 + $0x30] sm:$0xf]
        %v2247 = vld [vmem:[%s5 + $0x34] sm:$0xf]
        %v2248 = vld [vmem:[%s5 + $0x38] sm:$0xf]
        %v2249 = vld [vmem:[%s5 + $0x3c] sm:$0xf]
        %v2250 = vld [vmem:[%s6] sm:$0x1]
        %v2252 = vlaneseq
        %v2253 = vshrl.u32 %v2252, 7
        %v2254 = vsub.s32 0, %v2253
        %v2255 = vrot.slane %v2250, %v2254
        %v2265 = vunpack.c.l.b16 %v2226
        %v2266 = vunpack.c.l.b16 %v2227
        %v2267 = vunpack.c.l.b16 %v2228
        %v2268 = vunpack.c.l.b16 %v2229
        %v2269 = vunpack.c.l.b16 %v2230
        %v2270 = vunpack.c.l.b16 %v2231
        %v2271 = vunpack.c.l.b16 %v2232
        %v2272 = vunpack.c.l.b16 %v2233
        %vm2273 = vcmask 1041409
        %v2274 = vsel %vm2273, %v2266, %v2265
        %vm2275 = vcmask 1042434
        %v2276 = vsel %vm2275, %v2267, %v2274
        %vm2277 = vcmask 1043459
        %v2278 = vsel %vm2277, %v2268, %v2276
        %vm2279 = vcmask 1044484
        %v2280 = vsel %vm2279, %v2269, %v2278
        %vm2281 = vcmask 1045509
        %v2282 = vsel %vm2281, %v2270, %v2280
        %vm2283 = vcmask 1046534
        %v2284 = vsel %vm2283, %v2271, %v2282
        %vm2285 = vcmask 1047559
        %v2286 = vsel %vm2285, %v2272, %v2284
        %v2287 = vpack.c.b16 %v2286, %v2286
        %v2305 = vunpack.c.l.b16 %v2234
        %v2306 = vunpack.c.l.b16 %v2235
        %v2307 = vunpack.c.l.b16 %v2236
        %v2308 = vunpack.c.l.b16 %v2237
        %v2309 = vunpack.c.l.b16 %v2238
        %v2310 = vunpack.c.l.b16 %v2239
        %v2311 = vunpack.c.l.b16 %v2240
        %v2312 = vunpack.c.l.b16 %v2241
        %v2313 = vunpack.c.l.b16 %v2242
        %v2314 = vunpack.c.l.b16 %v2243
        %v2315 = vunpack.c.l.b16 %v2244
        %v2316 = vunpack.c.l.b16 %v2245
        %v2317 = vunpack.c.l.b16 %v2246
        %v2318 = vunpack.c.l.b16 %v2247
        %v2319 = vunpack.c.l.b16 %v2248
        %v2320 = vunpack.c.l.b16 %v2249
        %v2321 = vpack.c.b16 %v2306, %v2305
        %v2322 = vpack.c.b16 %v2308, %v2307
        %v2323 = vpack.c.b16 %v2310, %v2309
        %v2324 = vpack.c.b16 %v2312, %v2311
        %v2325 = vpack.c.b16 %v2314, %v2313
        %v2326 = vpack.c.b16 %v2316, %v2315
        %v2327 = vpack.c.b16 %v2318, %v2317
        %v2328 = vpack.c.b16 %v2320, %v2319
        %2337 = vmatprep.subr.bf16.mxu0 0
        %2338 = vmatpush1.bf16.msra.mxu0 %v2321
        %2339 = vmatprep.subr.bf16.mxu0 0
        %2340 = vmatpush1.bf16.msra.mxu0 %v2322
        %2341 = vmatprep.subr.bf16.mxu0 0
        %2342 = vmatpush1.bf16.msra.mxu0 %v2323
        %2343 = vmatprep.subr.bf16.mxu0 0
        %2344 = vmatpush1.bf16.msra.mxu0 %v2324
        %2345 = vmatprep.subr.bf16.mxu0 0
        %2346 = vmatpush1.bf16.msra.mxu0 %v2325
        %2347 = vmatprep.subr.bf16.mxu0 0
        %2348 = vmatpush1.bf16.msra.mxu0 %v2326
        %2349 = vmatprep.subr.bf16.mxu0 0
        %2350 = vmatpush1.bf16.msra.mxu0 %v2327
        %2351 = vmatprep.subr.bf16.mxu0 0
        %2352 = vmatpush1.bf16.msra.mxu0 %v2328
        %2353 = vmatprep.subr.bf16.mxu0 0
        %2354 = vmatpush1.bf16.msra.mxu0 0
        %2355 = vmatprep.subr.bf16.mxu0 0
        %2356 = vmatpush1.bf16.msra.mxu0 0
        %2357 = vmatprep.subr.bf16.mxu0 0
        %2358 = vmatpush1.bf16.msra.mxu0 0
        %2359 = vmatprep.subr.bf16.mxu0 0
        %2360 = vmatpush1.bf16.msra.mxu0 0
        %2361 = vmatprep.subr.bf16.mxu0 0
        %2362 = vmatpush1.bf16.msra.mxu0 0
        %2363 = vmatprep.subr.bf16.mxu0 0
        %2364 = vmatpush1.bf16.msra.mxu0 0
        %2365 = vmatprep.subr.bf16.mxu0 0
        %2366 = vmatpush1.bf16.msra.mxu0 0
        %2367 = vmatprep.subr.bf16.mxu0 0
        %2368 = vmatpush1.bf16.msra.mxu0 0
        %2369 = vmatprep.mubr.bf16.mxu0 0
        %2370 = vmatmul.mubr.bf16.gmra.mrb[0].mxu0 %v2287
        %v2371 = vpop.f32.mrb[0].mxu0
        %v2372 = vadd.f32 %v2255, %v2371
        %v2373 = vpop.f32.mrb[0].mxu0
        %v2374 = vpop.f32.mrb[0].mxu0
        %v2375 = vpop.f32.mrb[0].mxu0
        %2376 = vdwg.mxu0
        %2377 = vst [vmem:[%s274] sm:$0xff] %v2372
        %s2378 = sand.u32 %s181, 1
        %s2379 = scalar_lea.sflag [#allocation3], %s2378
        %s2380 = sand.u32 %s181, 1
        %s2381 = smul.addr %s2380, 8
        %s2382 = scalar_lea.vmem [#allocation2], %s2381
        // Predicated region
        $region49: #{tpu_custom_call.1} parent=47 // pred_check
          %p2383 = pneg %p191
        $region50: #{tpu_custom_call.1} parent=47 // pred_check_branch
          %2385 = sbr.rel (%p2383) target = $region52
        $region51: #{tpu_custom_call.1} parent=47 // pred_region
          %s2387 = ssub.s32 128, 128
          %2388 = vsyncadd %s2379, %s2387
          %s2389 = smul.addr %s21, 128
          %s2390 = scalar_lea.hbm %s7, %s2389
          %s2392 = sshll.u32 %s2382, 4
          %s2393 = int_to_ptr.vmem [resolvable:$true] %s2392
          %2395 = dma.vmem_to_hbm [thread:$0]  %s2393, 128, %s2390, %s2379
        $region52: #{tpu_custom_call.1} parent=47 // pred_fallthru
          _
      $region48: #{tpu_custom_call.1} parent=5 // pred_fallthru
        _
      %p2396 = scmp.le.s32.totalorder 2, %s16
      // Predicated region
      $region53: #{tpu_custom_call.1} parent=5 // pred_check
        %p2397 = pneg %p2396
      $region54: #{tpu_custom_call.1} parent=5 // pred_check_branch
        %2399 = sbr.rel (%p2397) target = $region56
      $region55: #{tpu_custom_call.1} parent=5 // pred_region
        %s2400 = ssub.s32 %s16, 2
        // Predicated region
        $region57: #{tpu_custom_call.1} parent=55 // pred_check
          %p2401 = pneg %p197
        $region58: #{tpu_custom_call.1} parent=55 // pred_check_branch
          %2403 = sbr.rel (%p2401) target = $region60
        $region59: #{tpu_custom_call.1} parent=55 // pred_region
          %s2404 = sand.u32 %s182, 1
          %s2405 = scalar_lea.sflag [#allocation3], %s2404
          %s2406 = sand.u32 %s182, 1
          %s2407 = smul.addr %s2406, 8
          %s2408 = scalar_lea.vmem [#allocation2], %s2407
          %2409 = dma.done %s2405, 128
        $region60: #{tpu_custom_call.1} parent=55 // pred_fallthru
          _
      $region56: #{tpu_custom_call.1} parent=5 // pred_fallthru
        _
    $region6: #{tpu_custom_call.1} parent=1 // loop_footer
      %s20 = sadd.s32 1, %s16
    $region7: #{tpu_custom_call.1} parent=1 // loop_footer_branch
      %15 = sbr.rel target = $region3
    $region8: #{tpu_custom_call.1} parent=1 // loop_exit
      _
    %2410 = vsyncpa [#allocation3], 1
    %s2411 = scalar_lea.sflag [#allocation3], 1
    %2412 = vsyncpa %s2411, 1

</llo_original>
